<compile_context>
chip_gen: v5e
topology: v5e:2x2
jax: 0.10.0
libtpu: 0.0.40
codegen_flags: <defaults>
</compile_context>

<pallas_src>
import functools
import math

import jax
import jax.numpy as jnp
from jax import lax
from jax.experimental import pallas as pl
from jax.experimental.pallas import tpu as pltpu

_LANES = 128
_ELEMS_PER_ROW = 2 * _LANES          # 128 interleaved (lat, lon) points per row
_MAX_TILE_ROWS = 2048                # 2 MiB / input block; 8 MiB double-buffered
_CHUNK_ROWS = 64                     # in-kernel chunk rows (bounds vreg pressure)


def _asin_poly(z):
    """Cephes single-precision asin minimax poly P(z): asin(x) ~ x + x*z*P(z), z=x^2."""
    p = jnp.float32(4.2163199048e-2)
    p = p * z + jnp.float32(2.4181311049e-2)
    p = p * z + jnp.float32(4.5470025998e-2)
    p = p * z + jnp.float32(7.4953002686e-2)
    p = p * z + jnp.float32(1.6666752422e-1)
    return p


def _central_angle(a):
    """2 * asin(sqrt(a)) for a in [0, 1]  (== 2 * atan2(sqrt(a), sqrt(1 - a)))."""
    s = jnp.sqrt(a)
    # |s| <= 0.5 branch.
    asin_lo = s + s * a * _asin_poly(a)
    # s > 0.5 branch: asin(s) = pi/2 - 2*asin(sqrt((1 - s)/2)).
    z = 0.5 * (1.0 - s)
    w = jnp.sqrt(z)
    asin_hi = jnp.float32(0.5 * math.pi) - 2.0 * (w + w * z * _asin_poly(z))
    return 2.0 * jnp.where(s > 0.5, asin_hi, asin_lo)


def _combined_loss_kernel(pred_ref, targ_ref, sse_ref, hav_ref, *,
                          tile_rows, chunk_rows, n_valid_elems, needs_mask):
    num_chunks = tile_rows // chunk_rows

    # Lane-deinterleave selection matrices (even lanes -> lat, odd lanes -> lon).
    # Built once per grid step from iotas; the deinterleave runs on the idle MXU.
    k_idx = lax.broadcasted_iota(jnp.int32, (_ELEMS_PER_ROW, _LANES), 0)
    j_idx = lax.broadcasted_iota(jnp.int32, (_ELEMS_PER_ROW, _LANES), 1)
    sel_even = (k_idx == 2 * j_idx).astype(jnp.float32)        # picks lat lanes
    sel_odd = (k_idx == 2 * j_idx + 1).astype(jnp.float32)     # picks lon lanes

    deg2rad = jnp.float32(math.pi / 180.0)
    half_deg2rad = jnp.float32(math.pi / 360.0)
    block_row0 = pl.program_id(0) * tile_rows

    def chunk_body(ci, carry):
        sse_acc, hav_acc = carry
        r0 = pl.multiple_of(ci * chunk_rows, chunk_rows)
        p = pred_ref[pl.ds(r0, chunk_rows), :]                  # (chunk, 256) deg
        t = targ_ref[pl.ds(r0, chunk_rows), :]

        if needs_mask:
            # The last grid block may run past the real data; zero the tail so
            # out-of-bounds garbage contributes nothing (and can't inject NaNs).
            row_ids = block_row0 + r0 + lax.broadcasted_iota(
                jnp.int32, (chunk_rows, _ELEMS_PER_ROW), 0)
            elem_ids = row_ids * _ELEMS_PER_ROW + lax.broadcasted_iota(
                jnp.int32, (chunk_rows, _ELEMS_PER_ROW), 1)
            valid = elem_ids < n_valid_elems
            p = jnp.where(valid, p, 0.0)
            t = jnp.where(valid, t, 0.0)

        # ---- MSE partial: squared (degree) errors on interleaved data (VPU only)
        diff = p - t
        dd = diff * diff                                         # (chunk, 256)
        dd128 = dd[:, :_LANES] + dd[:, _LANES:]                  # (chunk, 128)
        sse_acc = sse_acc + jnp.sum(
            dd128.reshape(chunk_rows // 8, 8, _LANES), axis=0)

        # ---- Haversine: MXU deinterleave to compact lanes, then EUP/VPU math --
        d_half = (t - p) * half_deg2rad      # interleaved (dlat/2, dlon/2) [rad]
        s_lat = (p + t) * deg2rad            # interleaved (plat+tlat, ...) [rad]
        dlat_h = jnp.dot(d_half, sel_even, precision=lax.Precision.HIGHEST,
                         preferred_element_type=jnp.float32)     # (chunk, 128)
        dlon_h = jnp.dot(d_half, sel_odd, precision=lax.Precision.HIGHEST,
                         preferred_element_type=jnp.float32)
        slat = jnp.dot(s_lat, sel_even, precision=lax.Precision.HIGHEST,
                       preferred_element_type=jnp.float32)

        s1 = jnp.sin(dlat_h)
        s2 = jnp.sin(dlon_h)
        s1sq = s1 * s1
        s2sq = s2 * s2
        cos_dlat = 1.0 - 2.0 * s1sq
        # cos(plat) * cos(tlat) == 0.5 * (cos(dlat) + cos(plat + tlat))   (exact)
        cc = 0.5 * (cos_dlat + jnp.cos(slat))
        a = jnp.clip(s1sq + cc * s2sq, 0.0, 1.0)
        c = _central_angle(a)                # central angle [rad]; 0 for padding

        hav_acc = hav_acc + jnp.sum(
            c.reshape(chunk_rows // 8, 8, _LANES), axis=0)
        return sse_acc, hav_acc

    zeros = jnp.zeros((8, _LANES), jnp.float32)
    sse_acc, hav_acc = lax.fori_loop(0, num_chunks, chunk_body, (zeros, zeros))
    sse_ref[...] = sse_acc
    hav_ref[...] = hav_acc


@functools.partial(jax.jit, static_argnames=("alpha", "radius", "max_tile_rows"))
def combined_distance_loss(pred, target, *, alpha=0.25, radius=6371.0,
                           max_tile_rows=_MAX_TILE_ROWS):
    if pred.shape != target.shape:
        raise ValueError("pred and target must have the same shape")
    if pred.shape[-1] != 2:
        raise ValueError("last dim must be (lat, lon)")

    pred = pred.astype(jnp.float32)
    target = target.astype(jnp.float32)

    n_points = math.prod(pred.shape[:-1])
    n_elems = 2 * n_points

    # Natural interleaved layout (free reshape; no XLA deinterleave pre-pass).
    # Pad only up to the next complete 256-lane row (and a minimum of 8 rows);
    # when n_points % 128 == 0 this is a pure metadata reshape (zero copy).
    pred_flat = pred.reshape(-1)
    targ_flat = target.reshape(-1)
    padded = max(8 * _ELEMS_PER_ROW,
                 pl.cdiv(n_elems, _ELEMS_PER_ROW) * _ELEMS_PER_ROW)
    if padded != n_elems:
        pred_flat = jnp.pad(pred_flat, (0, padded - n_elems))
        targ_flat = jnp.pad(targ_flat, (0, padded - n_elems))
    rows = padded // _ELEMS_PER_ROW
    pred2d = pred_flat.reshape(rows, _ELEMS_PER_ROW)
    targ2d = targ_flat.reshape(rows, _ELEMS_PER_ROW)

    # Tile selection: multiple of 8 rows, as large as allowed, but split into
    # >= 2 grid steps when possible so the "parallel" axis can use both v7x TCs.
    max_tile_rows = max(8, (int(max_tile_rows) // 8) * 8)
    tile_rows = min(max_tile_rows, (rows // 8) * 8)
    num_blocks = pl.cdiv(rows, tile_rows)
    if num_blocks == 1 and rows >= 16:
        tile_rows = 8 * pl.cdiv(rows, 16)
        num_blocks = pl.cdiv(rows, tile_rows)
    chunk_rows = math.gcd(tile_rows, _CHUNK_ROWS)   # multiple of 8, divides tile
    needs_mask = (rows % tile_rows != 0)            # only then OOB rows exist

    kernel = functools.partial(
        _combined_loss_kernel,
        tile_rows=tile_rows, chunk_rows=chunk_rows,
        n_valid_elems=n_elems, needs_mask=needs_mask)

    in_spec = pl.BlockSpec((tile_rows, _ELEMS_PER_ROW), lambda i: (i, 0))
    part_spec = pl.BlockSpec((8, _LANES), lambda i: (i, 0))

    cost = pl.CostEstimate(
        flops=int(n_points) * 1600,                 # ~768 MACs (MXU) + VPU work
        transcendentals=int(n_points) * 5,          # 2 sin + 1 cos + 2 sqrt
        bytes_accessed=int(n_elems) * 8 + int(num_blocks) * 8 * _LANES * 4 * 2)

    sse_part, hav_part = pl.pallas_call(
        kernel,
        out_shape=(
            jax.ShapeDtypeStruct((num_blocks * 8, _LANES), jnp.float32),  # SSE
            jax.ShapeDtypeStruct((num_blocks * 8, _LANES), jnp.float32),  # sum c
        ),
        grid_spec=pltpu.PrefetchScalarGridSpec(
            num_scalar_prefetch=0,
            grid=(num_blocks,),
            in_specs=[in_spec, in_spec],
            out_specs=(part_spec, part_spec),
        ),
        compiler_params=pltpu.CompilerParams(
            dimension_semantics=("parallel",)),     # stateless grid -> megacore OK
        cost_estimate=cost,
    )(pred2d, targ2d)

    # Tiny epilogue: two reductions over (num_blocks*8, 128) partials.
    mse = jnp.sum(sse_part) / jnp.float32(n_elems)
    haversine = jnp.float32(radius) * jnp.sum(hav_part) / jnp.float32(n_points)
    return jnp.float32(alpha) * mse + jnp.float32(1.0 - alpha) * haversine


def _reference_loss(pred, target, alpha=0.25, radius=6371.0):
    """Pure-JAX reference mirroring the PyTorch module."""
    pred = pred.astype(jnp.float32)
    target = target.astype(jnp.float32)
    mse = jnp.mean((pred - target) ** 2)
    plat = jnp.deg2rad(pred[..., 0])
    plon = jnp.deg2rad(pred[..., 1])
    tlat = jnp.deg2rad(target[..., 0])
    tlon = jnp.deg2rad(target[..., 1])
    dlat = tlat - plat
    dlon = tlon - plon
    a = jnp.sin(dlat / 2) ** 2 + jnp.cos(plat) * jnp.cos(tlat) * jnp.sin(dlon / 2) ** 2
    c = 2 * jnp.arctan2(jnp.sqrt(a), jnp.sqrt(1 - a))
    return alpha * mse + (1 - alpha) * jnp.mean(radius * c)


def _noisy_inputs(key, batch, seq, noise):
    k1, k2, k3 = jax.random.split(key, 3)
    lat = jax.random.uniform(k1, (batch, seq, 1), minval=-80.0, maxval=80.0)
    lon = jax.random.uniform(k2, (batch, seq, 1), minval=-170.0, maxval=170.0)
    pred = jnp.concatenate([lat, lon], axis=-1)
    target = pred + jax.random.normal(k3, (batch, seq, 2)) * noise
    return pred, target


if __name__ == "__main__":
    keys = jax.random.split(jax.random.PRNGKey(0), 3)

    # 1) Small trajectory batch (batch=2, seq=8): single grid step, padded rows.
    pred, target = _noisy_inputs(keys[0], 2, 8, noise=0.5)
    loss = jax.block_until_ready(combined_distance_loss(pred, target))
    ref = jax.block_until_ready(_reference_loss(pred, target))
    assert jnp.isfinite(loss), loss
    assert jnp.allclose(loss, ref, rtol=2e-3, atol=2e-3), (loss, ref)

    # 2) Ragged size (batch=3, seq=997; not a multiple of 128 points): two grid
    #    steps with a partial last block exercising the in-kernel tail mask.
    pred2, target2 = _noisy_inputs(keys[1], 3, 997, noise=1.0)
    loss2 = jax.block_until_ready(combined_distance_loss(pred2, target2))
    ref2 = jax.block_until_ready(_reference_loss(pred2, target2))
    assert jnp.isfinite(loss2), loss2
    assert jnp.allclose(loss2, ref2, rtol=2e-3, atol=2e-3), (loss2, ref2)

    # 3) Zero-copy path (batch=2, seq=8192 -> n_points % 128 == 0), independent
    #    pred/target (large distances exercise the asin high branch), small
    #    max_tile_rows to exercise a multi-block grid + chunked inner loop.
    k1, k2, k3, k4 = jax.random.split(keys[2], 4)
    pred3 = jnp.concatenate(
        [jax.random.uniform(k1, (2, 8192, 1), minval=-80.0, maxval=80.0),
         jax.random.uniform(k2, (2, 8192, 1), minval=-170.0, maxval=170.0)],
        axis=-1)
    target3 = jnp.concatenate(
        [jax.random.uniform(k3, (2, 8192, 1), minval=-80.0, maxval=80.0),
         jax.random.uniform(k4, (2, 8192, 1), minval=-170.0, maxval=170.0)],
        axis=-1)
    loss3 = jax.block_until_ready(
        combined_distance_loss(pred3, target3, max_tile_rows=24))
    ref3 = jax.block_until_ready(_reference_loss(pred3, target3))
    assert jnp.isfinite(loss3), loss3
    assert jnp.allclose(loss3, ref3, rtol=2e-3, atol=2e-3), (loss3, ref3)

    print("KERNEL_OK")
</pallas_src>

<mosaic_0001>
module attributes {stable_mosaic.version = 11 : i64} {
  func.func @_combined_loss_kernel(%arg0: i32, %arg1: memref<8x256xf32, #tpu.memory_space<vmem>>, %arg2: memref<8x256xf32, #tpu.memory_space<vmem>>, %arg3: memref<8x128xf32, #tpu.memory_space<vmem>>, %arg4: memref<8x128xf32, #tpu.memory_space<vmem>>) attributes {dimension_semantics = [#tpu.dimension_semantics<parallel>], iteration_bounds = array<i64: 1>, scalar_prefetch = 0 : i64, scratch_operands = 0 : i64, tpu.core_type = #tpu.core_type<tc>, window_params = [{transform_indices = @transform_0, window_bounds = array<i64: 8, 256>}, {transform_indices = @transform_1, window_bounds = array<i64: 8, 256>}, {transform_indices = @transform_2, window_bounds = array<i64: 8, 128>}, {transform_indices = @transform_3, window_bounds = array<i64: 8, 128>}]} {
    %0 = tpu.iota {dimensions = array<i32: 0>} : vector<256x128xi32>
    %1 = tpu.iota {dimensions = array<i32: 1>} : vector<256x128xi32>
    %c2_i32 = arith.constant 2 : i32
    %2 = vector.broadcast %c2_i32 : i32 to vector<256x128xi32>
    %3 = arith.muli %2, %1 : vector<256x128xi32>
    %4 = arith.cmpi eq, %0, %3 : vector<256x128xi32>
    %5 = arith.extui %4 : vector<256x128xi1> to vector<256x128xi32>
    %6 = arith.sitofp %5 : vector<256x128xi32> to vector<256x128xf32>
    %c2_i32_0 = arith.constant 2 : i32
    %7 = vector.broadcast %c2_i32_0 : i32 to vector<256x128xi32>
    %8 = arith.muli %7, %1 : vector<256x128xi32>
    %c1_i32 = arith.constant 1 : i32
    %9 = vector.broadcast %c1_i32 : i32 to vector<256x128xi32>
    %10 = arith.addi %8, %9 : vector<256x128xi32>
    %11 = arith.cmpi eq, %0, %10 : vector<256x128xi32>
    %12 = arith.extui %11 : vector<256x128xi1> to vector<256x128xi32>
    %13 = arith.sitofp %12 : vector<256x128xi32> to vector<256x128xf32>
    %cst = arith.constant 0.000000e+00 : f32
    %14 = vector.broadcast %cst : f32 to vector<8x128xf32>
    %cst_1 = arith.constant 0.00872664619 : f32
    %cst_2 = arith.constant 0.0174532924 : f32
    %c0_i32 = arith.constant 0 : i32
    %c8_i32 = arith.constant 8 : i32
    %15 = arith.muli %c0_i32, %c8_i32 : i32
    %16 = tpu.assume_multiple %15, 8 : i32
    %17 = arith.index_cast %16 : i32 to index
    %c0 = arith.constant 0 : index
    %18 = vector.load %arg1[%17, %c0] : memref<8x256xf32, #tpu.memory_space<vmem>>, vector<8x256xf32>
    %19 = arith.index_cast %16 : i32 to index
    %c0_3 = arith.constant 0 : index
    %20 = vector.load %arg2[%19, %c0_3] : memref<8x256xf32, #tpu.memory_space<vmem>>, vector<8x256xf32>
    %21 = arith.subf %18, %20 : vector<8x256xf32>
    %22 = arith.mulf %21, %21 : vector<8x256xf32>
    %23 = vector.extract_strided_slice %22 {offsets = [0, 0], sizes = [8, 128], strides = [1, 1]} : vector<8x256xf32> to vector<8x128xf32>
    %24 = vector.extract_strided_slice %22 {offsets = [0, 128], sizes = [8, 128], strides = [1, 1]} : vector<8x256xf32> to vector<8x128xf32>
    %25 = arith.addf %23, %24 : vector<8x128xf32>
    %26 = vector.shape_cast %25 : vector<8x128xf32> to vector<1x8x128xf32>
    %cst_4 = arith.constant dense<0.000000e+00> : vector<8x128xf32>
    %27 = vector.multi_reduction <add>, %26, %cst_4 [0] : vector<1x8x128xf32> to vector<8x128xf32>
    %28 = arith.addf %14, %27 : vector<8x128xf32>
    %29 = arith.subf %20, %18 : vector<8x256xf32>
    %30 = vector.broadcast %cst_1 : f32 to vector<8x256xf32>
    %31 = arith.mulf %29, %30 : vector<8x256xf32>
    %32 = arith.addf %18, %20 : vector<8x256xf32>
    %33 = vector.broadcast %cst_2 : f32 to vector<8x256xf32>
    %34 = arith.mulf %32, %33 : vector<8x256xf32>
    %cst_5 = arith.constant dense<0.000000e+00> : vector<8x128xf32>
    %35 = tpu.matmul %31, %6, %cst_5 {dimension_numbers = #tpu.dot_dimension_numbers<[1], [0], [0], [1], [0, 0, 1, 1], [], []>, precision = #tpu.contract_precision<fp32>} : vector<8x256xf32>, vector<256x128xf32>, vector<8x128xf32> -> vector<8x128xf32>
    %cst_6 = arith.constant dense<0.000000e+00> : vector<8x128xf32>
    %36 = tpu.matmul %31, %13, %cst_6 {dimension_numbers = #tpu.dot_dimension_numbers<[1], [0], [0], [1], [0, 0, 1, 1], [], []>, precision = #tpu.contract_precision<fp32>} : vector<8x256xf32>, vector<256x128xf32>, vector<8x128xf32> -> vector<8x128xf32>
    %cst_7 = arith.constant dense<0.000000e+00> : vector<8x128xf32>
    %37 = tpu.matmul %34, %6, %cst_7 {dimension_numbers = #tpu.dot_dimension_numbers<[1], [0], [0], [1], [0, 0, 1, 1], [], []>, precision = #tpu.contract_precision<fp32>} : vector<8x256xf32>, vector<256x128xf32>, vector<8x128xf32> -> vector<8x128xf32>
    %38 = math.sin %35 : vector<8x128xf32>
    %39 = math.sin %36 : vector<8x128xf32>
    %40 = arith.mulf %38, %38 : vector<8x128xf32>
    %41 = arith.mulf %39, %39 : vector<8x128xf32>
    %cst_8 = arith.constant 2.000000e+00 : f32
    %42 = vector.broadcast %cst_8 : f32 to vector<8x128xf32>
    %43 = arith.mulf %42, %40 : vector<8x128xf32>
    %cst_9 = arith.constant 1.000000e+00 : f32
    %44 = vector.broadcast %cst_9 : f32 to vector<8x128xf32>
    %45 = arith.subf %44, %43 : vector<8x128xf32>
    %46 = math.cos %37 : vector<8x128xf32>
    %47 = arith.addf %45, %46 : vector<8x128xf32>
    %cst_10 = arith.constant 5.000000e-01 : f32
    %48 = vector.broadcast %cst_10 : f32 to vector<8x128xf32>
    %49 = arith.mulf %48, %47 : vector<8x128xf32>
    %50 = arith.mulf %49, %41 : vector<8x128xf32>
    %51 = arith.addf %40, %50 : vector<8x128xf32>
    %cst_11 = arith.constant 0.000000e+00 : f32
    %cst_12 = arith.constant 1.000000e+00 : f32
    %52 = vector.broadcast %cst_11 : f32 to vector<8x128xf32>
    %53 = arith.maximumf %52, %51 : vector<8x128xf32>
    %54 = vector.broadcast %cst_12 : f32 to vector<8x128xf32>
    %55 = arith.minimumf %54, %53 : vector<8x128xf32>
    %56 = math.sqrt %55 : vector<8x128xf32>
    %57 = arith.mulf %56, %55 : vector<8x128xf32>
    %cst_13 = arith.constant 4.216320e-02 : f32
    %58 = vector.broadcast %cst_13 : f32 to vector<8x128xf32>
    %59 = arith.mulf %58, %55 : vector<8x128xf32>
    %cst_14 = arith.constant 0.024181312 : f32
    %60 = vector.broadcast %cst_14 : f32 to vector<8x128xf32>
    %61 = arith.addf %59, %60 : vector<8x128xf32>
    %62 = arith.mulf %61, %55 : vector<8x128xf32>
    %cst_15 = arith.constant 0.0454700254 : f32
    %63 = vector.broadcast %cst_15 : f32 to vector<8x128xf32>
    %64 = arith.addf %62, %63 : vector<8x128xf32>
    %65 = arith.mulf %64, %55 : vector<8x128xf32>
    %cst_16 = arith.constant 0.0749530047 : f32
    %66 = vector.broadcast %cst_16 : f32 to vector<8x128xf32>
    %67 = arith.addf %65, %66 : vector<8x128xf32>
    %68 = arith.mulf %67, %55 : vector<8x128xf32>
    %cst_17 = arith.constant 0.166667521 : f32
    %69 = vector.broadcast %cst_17 : f32 to vector<8x128xf32>
    %70 = arith.addf %68, %69 : vector<8x128xf32>
    %71 = arith.mulf %57, %70 : vector<8x128xf32>
    %72 = arith.addf %56, %71 : vector<8x128xf32>
    %cst_18 = arith.constant 1.000000e+00 : f32
    %73 = vector.broadcast %cst_18 : f32 to vector<8x128xf32>
    %74 = arith.subf %73, %56 : vector<8x128xf32>
    %cst_19 = arith.constant 5.000000e-01 : f32
    %75 = vector.broadcast %cst_19 : f32 to vector<8x128xf32>
    %76 = arith.mulf %75, %74 : vector<8x128xf32>
    %77 = math.sqrt %76 : vector<8x128xf32>
    %78 = arith.mulf %77, %76 : vector<8x128xf32>
    %cst_20 = arith.constant 4.216320e-02 : f32
    %79 = vector.broadcast %cst_20 : f32 to vector<8x128xf32>
    %80 = arith.mulf %79, %76 : vector<8x128xf32>
    %cst_21 = arith.constant 0.024181312 : f32
    %81 = vector.broadcast %cst_21 : f32 to vector<8x128xf32>
    %82 = arith.addf %80, %81 : vector<8x128xf32>
    %83 = arith.mulf %82, %76 : vector<8x128xf32>
    %cst_22 = arith.constant 0.0454700254 : f32
    %84 = vector.broadcast %cst_22 : f32 to vector<8x128xf32>
    %85 = arith.addf %83, %84 : vector<8x128xf32>
    %86 = arith.mulf %85, %76 : vector<8x128xf32>
    %cst_23 = arith.constant 0.0749530047 : f32
    %87 = vector.broadcast %cst_23 : f32 to vector<8x128xf32>
    %88 = arith.addf %86, %87 : vector<8x128xf32>
    %89 = arith.mulf %88, %76 : vector<8x128xf32>
    %cst_24 = arith.constant 0.166667521 : f32
    %90 = vector.broadcast %cst_24 : f32 to vector<8x128xf32>
    %91 = arith.addf %89, %90 : vector<8x128xf32>
    %92 = arith.mulf %78, %91 : vector<8x128xf32>
    %93 = arith.addf %77, %92 : vector<8x128xf32>
    %cst_25 = arith.constant 2.000000e+00 : f32
    %94 = vector.broadcast %cst_25 : f32 to vector<8x128xf32>
    %95 = arith.mulf %94, %93 : vector<8x128xf32>
    %cst_26 = arith.constant 1.57079637 : f32
    %96 = vector.broadcast %cst_26 : f32 to vector<8x128xf32>
    %97 = arith.subf %96, %95 : vector<8x128xf32>
    %cst_27 = arith.constant 5.000000e-01 : f32
    %98 = vector.broadcast %cst_27 : f32 to vector<8x128xf32>
    %99 = arith.cmpf ogt, %56, %98 : vector<8x128xf32>
    %100 = arith.select %99, %97, %72 : vector<8x128xi1>, vector<8x128xf32>
    %cst_28 = arith.constant 2.000000e+00 : f32
    %101 = vector.broadcast %cst_28 : f32 to vector<8x128xf32>
    %102 = arith.mulf %101, %100 : vector<8x128xf32>
    %103 = vector.shape_cast %102 : vector<8x128xf32> to vector<1x8x128xf32>
    %cst_29 = arith.constant dense<0.000000e+00> : vector<8x128xf32>
    %104 = vector.multi_reduction <add>, %103, %cst_29 [0] : vector<1x8x128xf32> to vector<8x128xf32>
    %105 = arith.addf %14, %104 : vector<8x128xf32>
    %c1_i32_30 = arith.constant 1 : i32
    %c0_31 = arith.constant 0 : index
    %c0_32 = arith.constant 0 : index
    %106 = vector.load %arg3[%c0_31, %c0_32] : memref<8x128xf32, #tpu.memory_space<vmem>>, vector<8x128xf32>
    tpu.vector_store %arg3[%c0_31, %c0_32], %28 {strides = array<i32>} : memref<8x128xf32, #tpu.memory_space<vmem>>, vector<8x128xf32>,
    %c0_33 = arith.constant 0 : index
    %c0_34 = arith.constant 0 : index
    %107 = vector.load %arg4[%c0_33, %c0_34] : memref<8x128xf32, #tpu.memory_space<vmem>>, vector<8x128xf32>
    tpu.vector_store %arg4[%c0_33, %c0_34], %105 {strides = array<i32>} : memref<8x128xf32, #tpu.memory_space<vmem>>, vector<8x128xf32>,
    return
  }
  func.func @transform_0(%arg0: i32) -> (i32, i32) {
    %c0_i32 = arith.constant 0 : i32
    %c0_i32_0 = arith.constant 0 : i32
    return %arg0, %c0_i32 : i32, i32
  }
  func.func @transform_1(%arg0: i32) -> (i32, i32) {
    %c0_i32 = arith.constant 0 : i32
    %c0_i32_0 = arith.constant 0 : i32
    return %arg0, %c0_i32 : i32, i32
  }
  func.func @transform_2(%arg0: i32) -> (i32, i32) {
    %c0_i32 = arith.constant 0 : i32
    %c0_i32_0 = arith.constant 0 : i32
    return %arg0, %c0_i32 : i32, i32
  }
  func.func @transform_3(%arg0: i32) -> (i32, i32) {
    %c0_i32 = arith.constant 0 : i32
    %c0_i32_0 = arith.constant 0 : i32
    return %arg0, %c0_i32 : i32, i32
  }
}

</mosaic_0001>

<llo_original>
// kernel: combined_distance_loss.1
$region0: #{combined_distance_loss.1}
  #allocation0 [shape = 'u32[]', space=smem, size = 0x4, offset = 0x4, fixed_abs, tag = 'smem constant byte address 0x4 - core index']
  #allocation1 [shape = 'u32[72,128]{1,0:T(1,128)}', space=vmem, size = 0x9000, scoped, tag = 'internal scratch']
  %s0 = inlined_call_operand.vmem [shape: f32[8,256], index: 0, kind: input, shape index: {}]
  %s1 = inlined_call_operand.vmem [shape: f32[8,256], index: 1, kind: input, shape index: {}]
  %s2 = inlined_call_operand.vmem [shape: f32[8,128], index: 2, kind: output, shape index: {0}]
  %s3 = inlined_call_operand.vmem [shape: f32[8,128], index: 3, kind: output, shape index: {1}]
  %4 = xla_tuple %s2, %s3
  %s5 = sld [smem:[#allocation0]]
  $region26: #{combined_distance_loss.1} parent=0
    _
  %s7 = ssub.s32 1, %s5
  %s8 = scalar_select 0, %s7, %s5
  // Predicated region
  $region2: #{combined_distance_loss.1} parent=0 // pred_check
    _
  $region3: #{combined_distance_loss.1} parent=0 // pred_check_branch
    %10 = sbr.rel (0) target = $region5
  $region4: #{combined_distance_loss.1} parent=0 // pred_region
    _
  $region5: #{combined_distance_loss.1} parent=0 // pred_fallthru
    _
  // Predicated region
  $region6: #{combined_distance_loss.1} parent=0 // pred_check
    _
  $region7: #{combined_distance_loss.1} parent=0 // pred_check_branch
    %12 = sbr.rel (0) target = $region9
  $region8: #{combined_distance_loss.1} parent=0 // pred_region
    _
  $region9: #{combined_distance_loss.1} parent=0 // pred_fallthru
    _
  %v13 = vlaneseq
  %v14 = vshrl.u32 %v13, 7
  %v15 = vadd.s32 %v14, 8
  %v16 = vadd.s32 %v14, 16
  %v17 = vadd.s32 %v14, 24
  %v18 = vadd.s32 %v14, 32
  %v19 = vadd.s32 %v14, 40
  %v20 = vadd.s32 %v14, 48
  %v21 = vadd.s32 %v14, 56
  %v22 = vadd.s32 %v14, 64
  %v23 = vadd.s32 %v14, 72
  %v24 = vadd.s32 %v14, 80
  %v25 = vadd.s32 %v14, 88
  %v26 = vadd.s32 %v14, 96
  %v27 = vadd.s32 %v14, 104
  %v28 = vadd.s32 %v14, 112
  %v29 = vadd.s32 %v14, 120
  %v30 = vadd.s32 %v14, 128
  %v31 = vadd.s32 %v14, 136
  %v32 = vadd.s32 %v14, 144
  %v33 = vadd.s32 %v14, 152
  %v34 = vadd.s32 %v14, 160
  %v35 = vadd.s32 %v14, 168
  %v36 = vadd.s32 %v14, 176
  %v37 = vadd.s32 %v14, 184
  %v38 = vadd.s32 %v14, 192
  %v39 = vadd.s32 %v14, 200
  %v40 = vadd.s32 %v14, 208
  %v41 = vadd.s32 %v14, 216
  %v42 = vadd.s32 %v14, 224
  %v43 = vadd.s32 %v14, 232
  %v44 = vadd.s32 %v14, 240
  %v45 = vadd.s32 %v14, 248
  %v46 = vlaneseq
  %v47 = vand.u32 %v46, 127
  %v48 = vmul.u32 %v47, 2
  %vm49 = vcmp.eq.s32.totalorder %v14, %v48
  %vm50 = vcmp.eq.s32.totalorder %v15, %v48
  %vm51 = vcmp.eq.s32.totalorder %v16, %v48
  %vm52 = vcmp.eq.s32.totalorder %v17, %v48
  %vm53 = vcmp.eq.s32.totalorder %v18, %v48
  %vm54 = vcmp.eq.s32.totalorder %v19, %v48
  %vm55 = vcmp.eq.s32.totalorder %v20, %v48
  %vm56 = vcmp.eq.s32.totalorder %v21, %v48
  %vm57 = vcmp.eq.s32.totalorder %v22, %v48
  %vm58 = vcmp.eq.s32.totalorder %v23, %v48
  %vm59 = vcmp.eq.s32.totalorder %v24, %v48
  %vm60 = vcmp.eq.s32.totalorder %v25, %v48
  %vm61 = vcmp.eq.s32.totalorder %v26, %v48
  %vm62 = vcmp.eq.s32.totalorder %v27, %v48
  %vm63 = vcmp.eq.s32.totalorder %v28, %v48
  %vm64 = vcmp.eq.s32.totalorder %v29, %v48
  %vm65 = vcmp.eq.s32.totalorder %v30, %v48
  %vm66 = vcmp.eq.s32.totalorder %v31, %v48
  %vm67 = vcmp.eq.s32.totalorder %v32, %v48
  %vm68 = vcmp.eq.s32.totalorder %v33, %v48
  %vm69 = vcmp.eq.s32.totalorder %v34, %v48
  %vm70 = vcmp.eq.s32.totalorder %v35, %v48
  %vm71 = vcmp.eq.s32.totalorder %v36, %v48
  %vm72 = vcmp.eq.s32.totalorder %v37, %v48
  %vm73 = vcmp.eq.s32.totalorder %v38, %v48
  %vm74 = vcmp.eq.s32.totalorder %v39, %v48
  %vm75 = vcmp.eq.s32.totalorder %v40, %v48
  %vm76 = vcmp.eq.s32.totalorder %v41, %v48
  %vm77 = vcmp.eq.s32.totalorder %v42, %v48
  %vm78 = vcmp.eq.s32.totalorder %v43, %v48
  %vm79 = vcmp.eq.s32.totalorder %v44, %v48
  %vm80 = vcmp.eq.s32.totalorder %v45, %v48
  %v81 = vsel %vm49, 1, 0
  %v82 = vsel %vm50, 1, 0
  %v83 = vsel %vm51, 1, 0
  %v84 = vsel %vm52, 1, 0
  %v85 = vsel %vm53, 1, 0
  %v86 = vsel %vm54, 1, 0
  %v87 = vsel %vm55, 1, 0
  %v88 = vsel %vm56, 1, 0
  %v89 = vsel %vm57, 1, 0
  %v90 = vsel %vm58, 1, 0
  %v91 = vsel %vm59, 1, 0
  %v92 = vsel %vm60, 1, 0
  %v93 = vsel %vm61, 1, 0
  %v94 = vsel %vm62, 1, 0
  %v95 = vsel %vm63, 1, 0
  %v96 = vsel %vm64, 1, 0
  %v97 = vsel %vm65, 1, 0
  %v98 = vsel %vm66, 1, 0
  %v99 = vsel %vm67, 1, 0
  %v100 = vsel %vm68, 1, 0
  %v101 = vsel %vm69, 1, 0
  %v102 = vsel %vm70, 1, 0
  %v103 = vsel %vm71, 1, 0
  %v104 = vsel %vm72, 1, 0
  %v105 = vsel %vm73, 1, 0
  %v106 = vsel %vm74, 1, 0
  %v107 = vsel %vm75, 1, 0
  %v108 = vsel %vm76, 1, 0
  %v109 = vsel %vm77, 1, 0
  %v110 = vsel %vm78, 1, 0
  %v111 = vsel %vm79, 1, 0
  %v112 = vsel %vm80, 1, 0
  %v113 = vcvt.s32.f32 %v81
  %v114 = vcvt.s32.f32 %v82
  %v115 = vcvt.s32.f32 %v83
  %v116 = vcvt.s32.f32 %v84
  %v117 = vcvt.s32.f32 %v85
  %v118 = vcvt.s32.f32 %v86
  %v119 = vcvt.s32.f32 %v87
  %v120 = vcvt.s32.f32 %v88
  %v121 = vcvt.s32.f32 %v89
  %v122 = vcvt.s32.f32 %v90
  %v123 = vcvt.s32.f32 %v91
  %v124 = vcvt.s32.f32 %v92
  %v125 = vcvt.s32.f32 %v93
  %v126 = vcvt.s32.f32 %v94
  %v127 = vcvt.s32.f32 %v95
  %v128 = vcvt.s32.f32 %v96
  %v129 = vcvt.s32.f32 %v97
  %v130 = vcvt.s32.f32 %v98
  %v131 = vcvt.s32.f32 %v99
  %v132 = vcvt.s32.f32 %v100
  %v133 = vcvt.s32.f32 %v101
  %v134 = vcvt.s32.f32 %v102
  %v135 = vcvt.s32.f32 %v103
  %v136 = vcvt.s32.f32 %v104
  %v137 = vcvt.s32.f32 %v105
  %v138 = vcvt.s32.f32 %v106
  %v139 = vcvt.s32.f32 %v107
  %v140 = vcvt.s32.f32 %v108
  %v141 = vcvt.s32.f32 %v109
  %v142 = vcvt.s32.f32 %v110
  %v143 = vcvt.s32.f32 %v111
  %v144 = vcvt.s32.f32 %v112
  %v145 = vadd.s32 %v48, 1
  %vm146 = vcmp.eq.s32.totalorder %v14, %v145
  %vm147 = vcmp.eq.s32.totalorder %v15, %v145
  %vm148 = vcmp.eq.s32.totalorder %v16, %v145
  %vm149 = vcmp.eq.s32.totalorder %v17, %v145
  %vm150 = vcmp.eq.s32.totalorder %v18, %v145
  %vm151 = vcmp.eq.s32.totalorder %v19, %v145
  %vm152 = vcmp.eq.s32.totalorder %v20, %v145
  %vm153 = vcmp.eq.s32.totalorder %v21, %v145
  %vm154 = vcmp.eq.s32.totalorder %v22, %v145
  %vm155 = vcmp.eq.s32.totalorder %v23, %v145
  %vm156 = vcmp.eq.s32.totalorder %v24, %v145
  %vm157 = vcmp.eq.s32.totalorder %v25, %v145
  %vm158 = vcmp.eq.s32.totalorder %v26, %v145
  %vm159 = vcmp.eq.s32.totalorder %v27, %v145
  %vm160 = vcmp.eq.s32.totalorder %v28, %v145
  %vm161 = vcmp.eq.s32.totalorder %v29, %v145
  %vm162 = vcmp.eq.s32.totalorder %v30, %v145
  %vm163 = vcmp.eq.s32.totalorder %v31, %v145
  %vm164 = vcmp.eq.s32.totalorder %v32, %v145
  %vm165 = vcmp.eq.s32.totalorder %v33, %v145
  %vm166 = vcmp.eq.s32.totalorder %v34, %v145
  %vm167 = vcmp.eq.s32.totalorder %v35, %v145
  %vm168 = vcmp.eq.s32.totalorder %v36, %v145
  %vm169 = vcmp.eq.s32.totalorder %v37, %v145
  %vm170 = vcmp.eq.s32.totalorder %v38, %v145
  %vm171 = vcmp.eq.s32.totalorder %v39, %v145
  %vm172 = vcmp.eq.s32.totalorder %v40, %v145
  %vm173 = vcmp.eq.s32.totalorder %v41, %v145
  %vm174 = vcmp.eq.s32.totalorder %v42, %v145
  %vm175 = vcmp.eq.s32.totalorder %v43, %v145
  %vm176 = vcmp.eq.s32.totalorder %v44, %v145
  %vm177 = vcmp.eq.s32.totalorder %v45, %v145
  %v178 = vsel %vm146, 1, 0
  %v179 = vsel %vm147, 1, 0
  %v180 = vsel %vm148, 1, 0
  %v181 = vsel %vm149, 1, 0
  %v182 = vsel %vm150, 1, 0
  %v183 = vsel %vm151, 1, 0
  %v184 = vsel %vm152, 1, 0
  %v185 = vsel %vm153, 1, 0
  %v186 = vsel %vm154, 1, 0
  %v187 = vsel %vm155, 1, 0
  %v188 = vsel %vm156, 1, 0
  %v189 = vsel %vm157, 1, 0
  %v190 = vsel %vm158, 1, 0
  %v191 = vsel %vm159, 1, 0
  %v192 = vsel %vm160, 1, 0
  %v193 = vsel %vm161, 1, 0
  %v194 = vsel %vm162, 1, 0
  %v195 = vsel %vm163, 1, 0
  %v196 = vsel %vm164, 1, 0
  %v197 = vsel %vm165, 1, 0
  %v198 = vsel %vm166, 1, 0
  %v199 = vsel %vm167, 1, 0
  %v200 = vsel %vm168, 1, 0
  %v201 = vsel %vm169, 1, 0
  %v202 = vsel %vm170, 1, 0
  %v203 = vsel %vm171, 1, 0
  %v204 = vsel %vm172, 1, 0
  %v205 = vsel %vm173, 1, 0
  %v206 = vsel %vm174, 1, 0
  %v207 = vsel %vm175, 1, 0
  %v208 = vsel %vm176, 1, 0
  %v209 = vsel %vm177, 1, 0
  %v210 = vcvt.s32.f32 %v178
  %v211 = vcvt.s32.f32 %v179
  %v212 = vcvt.s32.f32 %v180
  %v213 = vcvt.s32.f32 %v181
  %v214 = vcvt.s32.f32 %v182
  %v215 = vcvt.s32.f32 %v183
  %v216 = vcvt.s32.f32 %v184
  %v217 = vcvt.s32.f32 %v185
  %v218 = vcvt.s32.f32 %v186
  %v219 = vcvt.s32.f32 %v187
  %v220 = vcvt.s32.f32 %v188
  %v221 = vcvt.s32.f32 %v189
  %v222 = vcvt.s32.f32 %v190
  %v223 = vcvt.s32.f32 %v191
  %v224 = vcvt.s32.f32 %v192
  %v225 = vcvt.s32.f32 %v193
  %v226 = vcvt.s32.f32 %v194
  %v227 = vcvt.s32.f32 %v195
  %v228 = vcvt.s32.f32 %v196
  %v229 = vcvt.s32.f32 %v197
  %v230 = vcvt.s32.f32 %v198
  %v231 = vcvt.s32.f32 %v199
  %v232 = vcvt.s32.f32 %v200
  %v233 = vcvt.s32.f32 %v201
  %v234 = vcvt.s32.f32 %v202
  %v235 = vcvt.s32.f32 %v203
  %v236 = vcvt.s32.f32 %v204
  %v237 = vcvt.s32.f32 %v205
  %v238 = vcvt.s32.f32 %v206
  %v239 = vcvt.s32.f32 %v207
  %v240 = vcvt.s32.f32 %v208
  %v241 = vcvt.s32.f32 %v209
  %s242 = smul.u32 0, 2
  %s243 = smul.addr %s242, 8
  %s244 = scalar_lea.vmem %s0, %s243
  %v245 = vld [vmem:[%s244] sm:$0xff]
  %v246 = vld [vmem:[%s244 + $0x8] sm:$0xff]
  %s247 = smul.addr %s242, 8
  %s248 = scalar_lea.vmem %s1, %s247
  %v249 = vld [vmem:[%s248] sm:$0xff]
  %v250 = vld [vmem:[%s248 + $0x8] sm:$0xff]
  %v251 = vsub.f32 %v245, %v249
  %v252 = vsub.f32 %v246, %v250
  %v253 = vmul.f32 %v251, %v251
  %v254 = vmul.f32 %v252, %v252
  %v255 = vadd.f32 %v253, %v254
  %v256 = vadd.f32 %v255, 0.0
  %v257 = vadd.f32 %v256, 0.0
  %v258 = vsub.f32 %v249, %v245
  %v259 = vsub.f32 %v250, %v246
  %v260 = vmul.f32 %v258, 0.008726646
  %v261 = vmul.f32 %v259, 0.008726646
  %v262 = vadd.f32 %v245, %v249
  %v263 = vadd.f32 %v246, %v250
  %v264 = vmul.f32 %v262, 0.017453292
  %v265 = vmul.f32 %v263, 0.017453292
  %v266 = vand.u32 %v128, 4294901760
  %267 = vmatpush.msra.mxu0 %v266
  %v268 = vand.u32 %v127, 4294901760
  %269 = vmatpush.msra.mxu0 %v268
  %v270 = vand.u32 %v126, 4294901760
  %271 = vmatpush.msra.mxu0 %v270
  %v272 = vand.u32 %v125, 4294901760
  %273 = vmatpush.msra.mxu0 %v272
  %v274 = vand.u32 %v124, 4294901760
  %275 = vmatpush.msra.mxu0 %v274
  %v276 = vand.u32 %v123, 4294901760
  %277 = vmatpush.msra.mxu0 %v276
  %v278 = vand.u32 %v122, 4294901760
  %279 = vmatpush.msra.mxu0 %v278
  %v280 = vand.u32 %v121, 4294901760
  %281 = vmatpush.msra.mxu0 %v280
  %v282 = vand.u32 %v120, 4294901760
  %283 = vmatpush.msra.mxu0 %v282
  %v284 = vand.u32 %v119, 4294901760
  %285 = vmatpush.msra.mxu0 %v284
  %v286 = vand.u32 %v118, 4294901760
  %287 = vmatpush.msra.mxu0 %v286
  %v288 = vand.u32 %v117, 4294901760
  %289 = vmatpush.msra.mxu0 %v288
  %v290 = vand.u32 %v116, 4294901760
  %291 = vmatpush.msra.mxu0 %v290
  %v292 = vand.u32 %v115, 4294901760
  %293 = vmatpush.msra.mxu0 %v292
  %v294 = vand.u32 %v114, 4294901760
  %295 = vmatpush.msra.mxu0 %v294
  %v296 = vand.u32 %v113, 4294901760
  %297 = vmatpush.msra.mxu0 %v296
  %v298 = vand.u32 %v260, 4294901760
  %v299 = vsub.f32 %v260, %v298
  %v300 = vand.u32 %v299, 4294901760
  %v301 = vsub.f32 %v299, %v300
  %v302 = vand.u32 %v301, 4294901760
  %303 = vmatmul.f32.gmra.mxu0 %v302
  %v304 = vpop.f32.mrf.mxu0
  %v305 = vadd.f32 0.0, %v304
  %306 = vdwg.mxu0
  %v307 = vand.u32 %v128, 4294901760
  %v308 = vsub.f32 %v128, %v307
  %v309 = vand.u32 %v308, 4294901760
  %v310 = vsub.f32 %v308, %v309
  %v311 = vand.u32 %v310, 4294901760
  %312 = vmatpush.msra.mxu0 %v311
  %v313 = vand.u32 %v127, 4294901760
  %v314 = vsub.f32 %v127, %v313
  %v315 = vand.u32 %v314, 4294901760
  %v316 = vsub.f32 %v314, %v315
  %v317 = vand.u32 %v316, 4294901760
  %318 = vmatpush.msra.mxu0 %v317
  %v319 = vand.u32 %v126, 4294901760
  %v320 = vsub.f32 %v126, %v319
  %v321 = vand.u32 %v320, 4294901760
  %v322 = vsub.f32 %v320, %v321
  %v323 = vand.u32 %v322, 4294901760
  %324 = vmatpush.msra.mxu0 %v323
  %v325 = vand.u32 %v125, 4294901760
  %v326 = vsub.f32 %v125, %v325
  %v327 = vand.u32 %v326, 4294901760
  %v328 = vsub.f32 %v326, %v327
  %v329 = vand.u32 %v328, 4294901760
  %330 = vmatpush.msra.mxu0 %v329
  %v331 = vand.u32 %v124, 4294901760
  %v332 = vsub.f32 %v124, %v331
  %v333 = vand.u32 %v332, 4294901760
  %v334 = vsub.f32 %v332, %v333
  %v335 = vand.u32 %v334, 4294901760
  %336 = vmatpush.msra.mxu0 %v335
  %v337 = vand.u32 %v123, 4294901760
  %v338 = vsub.f32 %v123, %v337
  %v339 = vand.u32 %v338, 4294901760
  %v340 = vsub.f32 %v338, %v339
  %v341 = vand.u32 %v340, 4294901760
  %342 = vmatpush.msra.mxu0 %v341
  %v343 = vand.u32 %v122, 4294901760
  %v344 = vsub.f32 %v122, %v343
  %v345 = vand.u32 %v344, 4294901760
  %v346 = vsub.f32 %v344, %v345
  %v347 = vand.u32 %v346, 4294901760
  %348 = vmatpush.msra.mxu0 %v347
  %v349 = vand.u32 %v121, 4294901760
  %v350 = vsub.f32 %v121, %v349
  %v351 = vand.u32 %v350, 4294901760
  %v352 = vsub.f32 %v350, %v351
  %v353 = vand.u32 %v352, 4294901760
  %354 = vmatpush.msra.mxu0 %v353
  %v355 = vand.u32 %v120, 4294901760
  %v356 = vsub.f32 %v120, %v355
  %v357 = vand.u32 %v356, 4294901760
  %v358 = vsub.f32 %v356, %v357
  %v359 = vand.u32 %v358, 4294901760
  %360 = vmatpush.msra.mxu0 %v359
  %v361 = vand.u32 %v119, 4294901760
  %v362 = vsub.f32 %v119, %v361
  %v363 = vand.u32 %v362, 4294901760
  %v364 = vsub.f32 %v362, %v363
  %v365 = vand.u32 %v364, 4294901760
  %366 = vmatpush.msra.mxu0 %v365
  %v367 = vand.u32 %v118, 4294901760
  %v368 = vsub.f32 %v118, %v367
  %v369 = vand.u32 %v368, 4294901760
  %v370 = vsub.f32 %v368, %v369
  %v371 = vand.u32 %v370, 4294901760
  %372 = vmatpush.msra.mxu0 %v371
  %v373 = vand.u32 %v117, 4294901760
  %v374 = vsub.f32 %v117, %v373
  %v375 = vand.u32 %v374, 4294901760
  %v376 = vsub.f32 %v374, %v375
  %v377 = vand.u32 %v376, 4294901760
  %378 = vmatpush.msra.mxu0 %v377
  %v379 = vand.u32 %v116, 4294901760
  %v380 = vsub.f32 %v116, %v379
  %v381 = vand.u32 %v380, 4294901760
  %v382 = vsub.f32 %v380, %v381
  %v383 = vand.u32 %v382, 4294901760
  %384 = vmatpush.msra.mxu0 %v383
  %v385 = vand.u32 %v115, 4294901760
  %v386 = vsub.f32 %v115, %v385
  %v387 = vand.u32 %v386, 4294901760
  %v388 = vsub.f32 %v386, %v387
  %v389 = vand.u32 %v388, 4294901760
  %390 = vmatpush.msra.mxu0 %v389
  %v391 = vand.u32 %v114, 4294901760
  %v392 = vsub.f32 %v114, %v391
  %v393 = vand.u32 %v392, 4294901760
  %v394 = vsub.f32 %v392, %v393
  %v395 = vand.u32 %v394, 4294901760
  %396 = vmatpush.msra.mxu0 %v395
  %v397 = vand.u32 %v113, 4294901760
  %v398 = vsub.f32 %v113, %v397
  %v399 = vand.u32 %v398, 4294901760
  %v400 = vsub.f32 %v398, %v399
  %v401 = vand.u32 %v400, 4294901760
  %402 = vmatpush.msra.mxu0 %v401
  %v403 = vand.u32 %v260, 4294901760
  %404 = vmatmul.f32.gmra.mxu0 %v403
  %v405 = vpop.f32.mrf.mxu0
  %v406 = vadd.f32 %v305, %v405
  %407 = vdwg.mxu0
  %v408 = vand.u32 %v128, 4294901760
  %v409 = vsub.f32 %v128, %v408
  %410 = vmatpush.msra.mxu0 %v409
  %v411 = vand.u32 %v127, 4294901760
  %v412 = vsub.f32 %v127, %v411
  %413 = vmatpush.msra.mxu0 %v412
  %v414 = vand.u32 %v126, 4294901760
  %v415 = vsub.f32 %v126, %v414
  %416 = vmatpush.msra.mxu0 %v415
  %v417 = vand.u32 %v125, 4294901760
  %v418 = vsub.f32 %v125, %v417
  %419 = vmatpush.msra.mxu0 %v418
  %v420 = vand.u32 %v124, 4294901760
  %v421 = vsub.f32 %v124, %v420
  %422 = vmatpush.msra.mxu0 %v421
  %v423 = vand.u32 %v123, 4294901760
  %v424 = vsub.f32 %v123, %v423
  %425 = vmatpush.msra.mxu0 %v424
  %v426 = vand.u32 %v122, 4294901760
  %v427 = vsub.f32 %v122, %v426
  %428 = vmatpush.msra.mxu0 %v427
  %v429 = vand.u32 %v121, 4294901760
  %v430 = vsub.f32 %v121, %v429
  %431 = vmatpush.msra.mxu0 %v430
  %v432 = vand.u32 %v120, 4294901760
  %v433 = vsub.f32 %v120, %v432
  %434 = vmatpush.msra.mxu0 %v433
  %v435 = vand.u32 %v119, 4294901760
  %v436 = vsub.f32 %v119, %v435
  %437 = vmatpush.msra.mxu0 %v436
  %v438 = vand.u32 %v118, 4294901760
  %v439 = vsub.f32 %v118, %v438
  %440 = vmatpush.msra.mxu0 %v439
  %v441 = vand.u32 %v117, 4294901760
  %v442 = vsub.f32 %v117, %v441
  %443 = vmatpush.msra.mxu0 %v442
  %v444 = vand.u32 %v116, 4294901760
  %v445 = vsub.f32 %v116, %v444
  %446 = vmatpush.msra.mxu0 %v445
  %v447 = vand.u32 %v115, 4294901760
  %v448 = vsub.f32 %v115, %v447
  %449 = vmatpush.msra.mxu0 %v448
  %v450 = vand.u32 %v114, 4294901760
  %v451 = vsub.f32 %v114, %v450
  %452 = vmatpush.msra.mxu0 %v451
  %v453 = vand.u32 %v113, 4294901760
  %v454 = vsub.f32 %v113, %v453
  %455 = vmatpush.msra.mxu0 %v454
  %v456 = vand.u32 %v260, 4294901760
  %v457 = vsub.f32 %v260, %v456
  %458 = vmatmul.f32.gmra.mxu0 %v457
  %v459 = vpop.f32.mrf.mxu0
  %v460 = vadd.f32 %v406, %v459
  %461 = vdwg.mxu0
  %v462 = vand.u32 %v128, 4294901760
  %463 = vmatpush.msra.mxu0 %v462
  %v464 = vand.u32 %v127, 4294901760
  %465 = vmatpush.msra.mxu0 %v464
  %v466 = vand.u32 %v126, 4294901760
  %467 = vmatpush.msra.mxu0 %v466
  %v468 = vand.u32 %v125, 4294901760
  %469 = vmatpush.msra.mxu0 %v468
  %v470 = vand.u32 %v124, 4294901760
  %471 = vmatpush.msra.mxu0 %v470
  %v472 = vand.u32 %v123, 4294901760
  %473 = vmatpush.msra.mxu0 %v472
  %v474 = vand.u32 %v122, 4294901760
  %475 = vmatpush.msra.mxu0 %v474
  %v476 = vand.u32 %v121, 4294901760
  %477 = vmatpush.msra.mxu0 %v476
  %v478 = vand.u32 %v120, 4294901760
  %479 = vmatpush.msra.mxu0 %v478
  %v480 = vand.u32 %v119, 4294901760
  %481 = vmatpush.msra.mxu0 %v480
  %v482 = vand.u32 %v118, 4294901760
  %483 = vmatpush.msra.mxu0 %v482
  %v484 = vand.u32 %v117, 4294901760
  %485 = vmatpush.msra.mxu0 %v484
  %v486 = vand.u32 %v116, 4294901760
  %487 = vmatpush.msra.mxu0 %v486
  %v488 = vand.u32 %v115, 4294901760
  %489 = vmatpush.msra.mxu0 %v488
  %v490 = vand.u32 %v114, 4294901760
  %491 = vmatpush.msra.mxu0 %v490
  %v492 = vand.u32 %v113, 4294901760
  %493 = vmatpush.msra.mxu0 %v492
  %v494 = vand.u32 %v260, 4294901760
  %v495 = vsub.f32 %v260, %v494
  %v496 = vand.u32 %v495, 4294901760
  %497 = vmatmul.f32.gmra.mxu0 %v496
  %v498 = vpop.f32.mrf.mxu0
  %v499 = vadd.f32 %v460, %v498
  %500 = vdwg.mxu0
  %v501 = vand.u32 %v128, 4294901760
  %v502 = vsub.f32 %v128, %v501
  %v503 = vand.u32 %v502, 4294901760
  %504 = vmatpush.msra.mxu0 %v503
  %v505 = vand.u32 %v127, 4294901760
  %v506 = vsub.f32 %v127, %v505
  %v507 = vand.u32 %v506, 4294901760
  %508 = vmatpush.msra.mxu0 %v507
  %v509 = vand.u32 %v126, 4294901760
  %v510 = vsub.f32 %v126, %v509
  %v511 = vand.u32 %v510, 4294901760
  %512 = vmatpush.msra.mxu0 %v511
  %v513 = vand.u32 %v125, 4294901760
  %v514 = vsub.f32 %v125, %v513
  %v515 = vand.u32 %v514, 4294901760
  %516 = vmatpush.msra.mxu0 %v515
  %v517 = vand.u32 %v124, 4294901760
  %v518 = vsub.f32 %v124, %v517
  %v519 = vand.u32 %v518, 4294901760
  %520 = vmatpush.msra.mxu0 %v519
  %v521 = vand.u32 %v123, 4294901760
  %v522 = vsub.f32 %v123, %v521
  %v523 = vand.u32 %v522, 4294901760
  %524 = vmatpush.msra.mxu0 %v523
  %v525 = vand.u32 %v122, 4294901760
  %v526 = vsub.f32 %v122, %v525
  %v527 = vand.u32 %v526, 4294901760
  %528 = vmatpush.msra.mxu0 %v527
  %v529 = vand.u32 %v121, 4294901760
  %v530 = vsub.f32 %v121, %v529
  %v531 = vand.u32 %v530, 4294901760
  %532 = vmatpush.msra.mxu0 %v531
  %v533 = vand.u32 %v120, 4294901760
  %v534 = vsub.f32 %v120, %v533
  %v535 = vand.u32 %v534, 4294901760
  %536 = vmatpush.msra.mxu0 %v535
  %v537 = vand.u32 %v119, 4294901760
  %v538 = vsub.f32 %v119, %v537
  %v539 = vand.u32 %v538, 4294901760
  %540 = vmatpush.msra.mxu0 %v539
  %v541 = vand.u32 %v118, 4294901760
  %v542 = vsub.f32 %v118, %v541
  %v543 = vand.u32 %v542, 4294901760
  %544 = vmatpush.msra.mxu0 %v543
  %v545 = vand.u32 %v117, 4294901760
  %v546 = vsub.f32 %v117, %v545
  %v547 = vand.u32 %v546, 4294901760
  %548 = vmatpush.msra.mxu0 %v547
  %v549 = vand.u32 %v116, 4294901760
  %v550 = vsub.f32 %v116, %v549
  %v551 = vand.u32 %v550, 4294901760
  %552 = vmatpush.msra.mxu0 %v551
  %v553 = vand.u32 %v115, 4294901760
  %v554 = vsub.f32 %v115, %v553
  %v555 = vand.u32 %v554, 4294901760
  %556 = vmatpush.msra.mxu0 %v555
  %v557 = vand.u32 %v114, 4294901760
  %v558 = vsub.f32 %v114, %v557
  %v559 = vand.u32 %v558, 4294901760
  %560 = vmatpush.msra.mxu0 %v559
  %v561 = vand.u32 %v113, 4294901760
  %v562 = vsub.f32 %v113, %v561
  %v563 = vand.u32 %v562, 4294901760
  %564 = vmatpush.msra.mxu0 %v563
  %v565 = vand.u32 %v260, 4294901760
  %566 = vmatmul.f32.gmra.mxu0 %v565
  %v567 = vpop.f32.mrf.mxu0
  %v568 = vadd.f32 %v499, %v567
  %569 = vdwg.mxu0
  %v570 = vand.u32 %v128, 4294901760
  %571 = vmatpush.msra.mxu0 %v570
  %v572 = vand.u32 %v127, 4294901760
  %573 = vmatpush.msra.mxu0 %v572
  %v574 = vand.u32 %v126, 4294901760
  %575 = vmatpush.msra.mxu0 %v574
  %v576 = vand.u32 %v125, 4294901760
  %577 = vmatpush.msra.mxu0 %v576
  %v578 = vand.u32 %v124, 4294901760
  %579 = vmatpush.msra.mxu0 %v578
  %v580 = vand.u32 %v123, 4294901760
  %581 = vmatpush.msra.mxu0 %v580
  %v582 = vand.u32 %v122, 4294901760
  %583 = vmatpush.msra.mxu0 %v582
  %v584 = vand.u32 %v121, 4294901760
  %585 = vmatpush.msra.mxu0 %v584
  %v586 = vand.u32 %v120, 4294901760
  %587 = vmatpush.msra.mxu0 %v586
  %v588 = vand.u32 %v119, 4294901760
  %589 = vmatpush.msra.mxu0 %v588
  %v590 = vand.u32 %v118, 4294901760
  %591 = vmatpush.msra.mxu0 %v590
  %v592 = vand.u32 %v117, 4294901760
  %593 = vmatpush.msra.mxu0 %v592
  %v594 = vand.u32 %v116, 4294901760
  %595 = vmatpush.msra.mxu0 %v594
  %v596 = vand.u32 %v115, 4294901760
  %597 = vmatpush.msra.mxu0 %v596
  %v598 = vand.u32 %v114, 4294901760
  %599 = vmatpush.msra.mxu0 %v598
  %v600 = vand.u32 %v113, 4294901760
  %601 = vmatpush.msra.mxu0 %v600
  %v602 = vand.u32 %v260, 4294901760
  %603 = vmatmul.f32.gmra.mxu0 %v602
  %v604 = vpop.f32.mrf.mxu0
  %v605 = vadd.f32 %v568, %v604
  %606 = vdwg.mxu0
  %v607 = vand.u32 %v144, 4294901760
  %608 = vmatpush.msra.mxu0 %v607
  %v609 = vand.u32 %v143, 4294901760
  %610 = vmatpush.msra.mxu0 %v609
  %v611 = vand.u32 %v142, 4294901760
  %612 = vmatpush.msra.mxu0 %v611
  %v613 = vand.u32 %v141, 4294901760
  %614 = vmatpush.msra.mxu0 %v613
  %v615 = vand.u32 %v140, 4294901760
  %616 = vmatpush.msra.mxu0 %v615
  %v617 = vand.u32 %v139, 4294901760
  %618 = vmatpush.msra.mxu0 %v617
  %v619 = vand.u32 %v138, 4294901760
  %620 = vmatpush.msra.mxu0 %v619
  %v621 = vand.u32 %v137, 4294901760
  %622 = vmatpush.msra.mxu0 %v621
  %v623 = vand.u32 %v136, 4294901760
  %624 = vmatpush.msra.mxu0 %v623
  %v625 = vand.u32 %v135, 4294901760
  %626 = vmatpush.msra.mxu0 %v625
  %v627 = vand.u32 %v134, 4294901760
  %628 = vmatpush.msra.mxu0 %v627
  %v629 = vand.u32 %v133, 4294901760
  %630 = vmatpush.msra.mxu0 %v629
  %v631 = vand.u32 %v132, 4294901760
  %632 = vmatpush.msra.mxu0 %v631
  %v633 = vand.u32 %v131, 4294901760
  %634 = vmatpush.msra.mxu0 %v633
  %v635 = vand.u32 %v130, 4294901760
  %636 = vmatpush.msra.mxu0 %v635
  %v637 = vand.u32 %v129, 4294901760
  %638 = vmatpush.msra.mxu0 %v637
  %v639 = vand.u32 %v261, 4294901760
  %v640 = vsub.f32 %v261, %v639
  %v641 = vand.u32 %v640, 4294901760
  %v642 = vsub.f32 %v640, %v641
  %v643 = vand.u32 %v642, 4294901760
  %644 = vmatmul.f32.gmra.mxu0 %v643
  %v645 = vpop.f32.mrf.mxu0
  %v646 = vadd.f32 %v605, %v645
  %647 = vdwg.mxu0
  %v648 = vand.u32 %v144, 4294901760
  %v649 = vsub.f32 %v144, %v648
  %v650 = vand.u32 %v649, 4294901760
  %v651 = vsub.f32 %v649, %v650
  %v652 = vand.u32 %v651, 4294901760
  %653 = vmatpush.msra.mxu0 %v652
  %v654 = vand.u32 %v143, 4294901760
  %v655 = vsub.f32 %v143, %v654
  %v656 = vand.u32 %v655, 4294901760
  %v657 = vsub.f32 %v655, %v656
  %v658 = vand.u32 %v657, 4294901760
  %659 = vmatpush.msra.mxu0 %v658
  %v660 = vand.u32 %v142, 4294901760
  %v661 = vsub.f32 %v142, %v660
  %v662 = vand.u32 %v661, 4294901760
  %v663 = vsub.f32 %v661, %v662
  %v664 = vand.u32 %v663, 4294901760
  %665 = vmatpush.msra.mxu0 %v664
  %v666 = vand.u32 %v141, 4294901760
  %v667 = vsub.f32 %v141, %v666
  %v668 = vand.u32 %v667, 4294901760
  %v669 = vsub.f32 %v667, %v668
  %v670 = vand.u32 %v669, 4294901760
  %671 = vmatpush.msra.mxu0 %v670
  %v672 = vand.u32 %v140, 4294901760
  %v673 = vsub.f32 %v140, %v672
  %v674 = vand.u32 %v673, 4294901760
  %v675 = vsub.f32 %v673, %v674
  %v676 = vand.u32 %v675, 4294901760
  %677 = vmatpush.msra.mxu0 %v676
  %v678 = vand.u32 %v139, 4294901760
  %v679 = vsub.f32 %v139, %v678
  %v680 = vand.u32 %v679, 4294901760
  %v681 = vsub.f32 %v679, %v680
  %v682 = vand.u32 %v681, 4294901760
  %683 = vmatpush.msra.mxu0 %v682
  %v684 = vand.u32 %v138, 4294901760
  %v685 = vsub.f32 %v138, %v684
  %v686 = vand.u32 %v685, 4294901760
  %v687 = vsub.f32 %v685, %v686
  %v688 = vand.u32 %v687, 4294901760
  %689 = vmatpush.msra.mxu0 %v688
  %v690 = vand.u32 %v137, 4294901760
  %v691 = vsub.f32 %v137, %v690
  %v692 = vand.u32 %v691, 4294901760
  %v693 = vsub.f32 %v691, %v692
  %v694 = vand.u32 %v693, 4294901760
  %695 = vmatpush.msra.mxu0 %v694
  %v696 = vand.u32 %v136, 4294901760
  %v697 = vsub.f32 %v136, %v696
  %v698 = vand.u32 %v697, 4294901760
  %v699 = vsub.f32 %v697, %v698
  %v700 = vand.u32 %v699, 4294901760
  %701 = vmatpush.msra.mxu0 %v700
  %v702 = vand.u32 %v135, 4294901760
  %v703 = vsub.f32 %v135, %v702
  %v704 = vand.u32 %v703, 4294901760
  %v705 = vsub.f32 %v703, %v704
  %v706 = vand.u32 %v705, 4294901760
  %707 = vmatpush.msra.mxu0 %v706
  %v708 = vand.u32 %v134, 4294901760
  %v709 = vsub.f32 %v134, %v708
  %v710 = vand.u32 %v709, 4294901760
  %v711 = vsub.f32 %v709, %v710
  %v712 = vand.u32 %v711, 4294901760
  %713 = vmatpush.msra.mxu0 %v712
  %v714 = vand.u32 %v133, 4294901760
  %v715 = vsub.f32 %v133, %v714
  %v716 = vand.u32 %v715, 4294901760
  %v717 = vsub.f32 %v715, %v716
  %v718 = vand.u32 %v717, 4294901760
  %719 = vmatpush.msra.mxu0 %v718
  %v720 = vand.u32 %v132, 4294901760
  %v721 = vsub.f32 %v132, %v720
  %v722 = vand.u32 %v721, 4294901760
  %v723 = vsub.f32 %v721, %v722
  %v724 = vand.u32 %v723, 4294901760
  %725 = vmatpush.msra.mxu0 %v724
  %v726 = vand.u32 %v131, 4294901760
  %v727 = vsub.f32 %v131, %v726
  %v728 = vand.u32 %v727, 4294901760
  %v729 = vsub.f32 %v727, %v728
  %v730 = vand.u32 %v729, 4294901760
  %731 = vmatpush.msra.mxu0 %v730
  %v732 = vand.u32 %v130, 4294901760
  %v733 = vsub.f32 %v130, %v732
  %v734 = vand.u32 %v733, 4294901760
  %v735 = vsub.f32 %v733, %v734
  %v736 = vand.u32 %v735, 4294901760
  %737 = vmatpush.msra.mxu0 %v736
  %v738 = vand.u32 %v129, 4294901760
  %v739 = vsub.f32 %v129, %v738
  %v740 = vand.u32 %v739, 4294901760
  %v741 = vsub.f32 %v739, %v740
  %v742 = vand.u32 %v741, 4294901760
  %743 = vmatpush.msra.mxu0 %v742
  %v744 = vand.u32 %v261, 4294901760
  %745 = vmatmul.f32.gmra.mxu0 %v744
  %v746 = vpop.f32.mrf.mxu0
  %v747 = vadd.f32 %v646, %v746
  %748 = vdwg.mxu0
  %v749 = vand.u32 %v144, 4294901760
  %v750 = vsub.f32 %v144, %v749
  %751 = vmatpush.msra.mxu0 %v750
  %v752 = vand.u32 %v143, 4294901760
  %v753 = vsub.f32 %v143, %v752
  %754 = vmatpush.msra.mxu0 %v753
  %v755 = vand.u32 %v142, 4294901760
  %v756 = vsub.f32 %v142, %v755
  %757 = vmatpush.msra.mxu0 %v756
  %v758 = vand.u32 %v141, 4294901760
  %v759 = vsub.f32 %v141, %v758
  %760 = vmatpush.msra.mxu0 %v759
  %v761 = vand.u32 %v140, 4294901760
  %v762 = vsub.f32 %v140, %v761
  %763 = vmatpush.msra.mxu0 %v762
  %v764 = vand.u32 %v139, 4294901760
  %v765 = vsub.f32 %v139, %v764
  %766 = vmatpush.msra.mxu0 %v765
  %v767 = vand.u32 %v138, 4294901760
  %v768 = vsub.f32 %v138, %v767
  %769 = vmatpush.msra.mxu0 %v768
  %v770 = vand.u32 %v137, 4294901760
  %v771 = vsub.f32 %v137, %v770
  %772 = vmatpush.msra.mxu0 %v771
  %v773 = vand.u32 %v136, 4294901760
  %v774 = vsub.f32 %v136, %v773
  %775 = vmatpush.msra.mxu0 %v774
  %v776 = vand.u32 %v135, 4294901760
  %v777 = vsub.f32 %v135, %v776
  %778 = vmatpush.msra.mxu0 %v777
  %v779 = vand.u32 %v134, 4294901760
  %v780 = vsub.f32 %v134, %v779
  %781 = vmatpush.msra.mxu0 %v780
  %v782 = vand.u32 %v133, 4294901760
  %v783 = vsub.f32 %v133, %v782
  %784 = vmatpush.msra.mxu0 %v783
  %v785 = vand.u32 %v132, 4294901760
  %v786 = vsub.f32 %v132, %v785
  %787 = vmatpush.msra.mxu0 %v786
  %v788 = vand.u32 %v131, 4294901760
  %v789 = vsub.f32 %v131, %v788
  %790 = vmatpush.msra.mxu0 %v789
  %v791 = vand.u32 %v130, 4294901760
  %v792 = vsub.f32 %v130, %v791
  %793 = vmatpush.msra.mxu0 %v792
  %v794 = vand.u32 %v129, 4294901760
  %v795 = vsub.f32 %v129, %v794
  %796 = vmatpush.msra.mxu0 %v795
  %v797 = vand.u32 %v261, 4294901760
  %v798 = vsub.f32 %v261, %v797
  %799 = vmatmul.f32.gmra.mxu0 %v798
  %v800 = vpop.f32.mrf.mxu0
  %v801 = vadd.f32 %v747, %v800
  %802 = vdwg.mxu0
  %v803 = vand.u32 %v144, 4294901760
  %804 = vmatpush.msra.mxu0 %v803
  %v805 = vand.u32 %v143, 4294901760
  %806 = vmatpush.msra.mxu0 %v805
  %v807 = vand.u32 %v142, 4294901760
  %808 = vmatpush.msra.mxu0 %v807
  %v809 = vand.u32 %v141, 4294901760
  %810 = vmatpush.msra.mxu0 %v809
  %v811 = vand.u32 %v140, 4294901760
  %812 = vmatpush.msra.mxu0 %v811
  %v813 = vand.u32 %v139, 4294901760
  %814 = vmatpush.msra.mxu0 %v813
  %v815 = vand.u32 %v138, 4294901760
  %816 = vmatpush.msra.mxu0 %v815
  %v817 = vand.u32 %v137, 4294901760
  %818 = vmatpush.msra.mxu0 %v817
  %v819 = vand.u32 %v136, 4294901760
  %820 = vmatpush.msra.mxu0 %v819
  %v821 = vand.u32 %v135, 4294901760
  %822 = vmatpush.msra.mxu0 %v821
  %v823 = vand.u32 %v134, 4294901760
  %824 = vmatpush.msra.mxu0 %v823
  %v825 = vand.u32 %v133, 4294901760
  %826 = vmatpush.msra.mxu0 %v825
  %v827 = vand.u32 %v132, 4294901760
  %828 = vmatpush.msra.mxu0 %v827
  %v829 = vand.u32 %v131, 4294901760
  %830 = vmatpush.msra.mxu0 %v829
  %v831 = vand.u32 %v130, 4294901760
  %832 = vmatpush.msra.mxu0 %v831
  %v833 = vand.u32 %v129, 4294901760
  %834 = vmatpush.msra.mxu0 %v833
  %v835 = vand.u32 %v261, 4294901760
  %v836 = vsub.f32 %v261, %v835
  %v837 = vand.u32 %v836, 4294901760
  %838 = vmatmul.f32.gmra.mxu0 %v837
  %v839 = vpop.f32.mrf.mxu0
  %v840 = vadd.f32 %v801, %v839
  %841 = vdwg.mxu0
  %v842 = vand.u32 %v144, 4294901760
  %v843 = vsub.f32 %v144, %v842
  %v844 = vand.u32 %v843, 4294901760
  %845 = vmatpush.msra.mxu0 %v844
  %v846 = vand.u32 %v143, 4294901760
  %v847 = vsub.f32 %v143, %v846
  %v848 = vand.u32 %v847, 4294901760
  %849 = vmatpush.msra.mxu0 %v848
  %v850 = vand.u32 %v142, 4294901760
  %v851 = vsub.f32 %v142, %v850
  %v852 = vand.u32 %v851, 4294901760
  %853 = vmatpush.msra.mxu0 %v852
  %v854 = vand.u32 %v141, 4294901760
  %v855 = vsub.f32 %v141, %v854
  %v856 = vand.u32 %v855, 4294901760
  %857 = vmatpush.msra.mxu0 %v856
  %v858 = vand.u32 %v140, 4294901760
  %v859 = vsub.f32 %v140, %v858
  %v860 = vand.u32 %v859, 4294901760
  %861 = vmatpush.msra.mxu0 %v860
  %v862 = vand.u32 %v139, 4294901760
  %v863 = vsub.f32 %v139, %v862
  %v864 = vand.u32 %v863, 4294901760
  %865 = vmatpush.msra.mxu0 %v864
  %v866 = vand.u32 %v138, 4294901760
  %v867 = vsub.f32 %v138, %v866
  %v868 = vand.u32 %v867, 4294901760
  %869 = vmatpush.msra.mxu0 %v868
  %v870 = vand.u32 %v137, 4294901760
  %v871 = vsub.f32 %v137, %v870
  %v872 = vand.u32 %v871, 4294901760
  %873 = vmatpush.msra.mxu0 %v872
  %v874 = vand.u32 %v136, 4294901760
  %v875 = vsub.f32 %v136, %v874
  %v876 = vand.u32 %v875, 4294901760
  %877 = vmatpush.msra.mxu0 %v876
  %v878 = vand.u32 %v135, 4294901760
  %v879 = vsub.f32 %v135, %v878
  %v880 = vand.u32 %v879, 4294901760
  %881 = vmatpush.msra.mxu0 %v880
  %v882 = vand.u32 %v134, 4294901760
  %v883 = vsub.f32 %v134, %v882
  %v884 = vand.u32 %v883, 4294901760
  %885 = vmatpush.msra.mxu0 %v884
  %v886 = vand.u32 %v133, 4294901760
  %v887 = vsub.f32 %v133, %v886
  %v888 = vand.u32 %v887, 4294901760
  %889 = vmatpush.msra.mxu0 %v888
  %v890 = vand.u32 %v132, 4294901760
  %v891 = vsub.f32 %v132, %v890
  %v892 = vand.u32 %v891, 4294901760
  %893 = vmatpush.msra.mxu0 %v892
  %v894 = vand.u32 %v131, 4294901760
  %v895 = vsub.f32 %v131, %v894
  %v896 = vand.u32 %v895, 4294901760
  %897 = vmatpush.msra.mxu0 %v896
  %v898 = vand.u32 %v130, 4294901760
  %v899 = vsub.f32 %v130, %v898
  %v900 = vand.u32 %v899, 4294901760
  %901 = vmatpush.msra.mxu0 %v900
  %v902 = vand.u32 %v129, 4294901760
  %v903 = vsub.f32 %v129, %v902
  %v904 = vand.u32 %v903, 4294901760
  %905 = vmatpush.msra.mxu0 %v904
  %v906 = vand.u32 %v261, 4294901760
  %907 = vmatmul.f32.gmra.mxu0 %v906
  %v908 = vpop.f32.mrf.mxu0
  %v909 = vadd.f32 %v840, %v908
  %910 = vdwg.mxu0
  %v911 = vand.u32 %v144, 4294901760
  %912 = vmatpush.msra.mxu0 %v911
  %v913 = vand.u32 %v143, 4294901760
  %914 = vmatpush.msra.mxu0 %v913
  %v915 = vand.u32 %v142, 4294901760
  %916 = vmatpush.msra.mxu0 %v915
  %v917 = vand.u32 %v141, 4294901760
  %918 = vmatpush.msra.mxu0 %v917
  %v919 = vand.u32 %v140, 4294901760
  %920 = vmatpush.msra.mxu0 %v919
  %v921 = vand.u32 %v139, 4294901760
  %922 = vmatpush.msra.mxu0 %v921
  %v923 = vand.u32 %v138, 4294901760
  %924 = vmatpush.msra.mxu0 %v923
  %v925 = vand.u32 %v137, 4294901760
  %926 = vmatpush.msra.mxu0 %v925
  %v927 = vand.u32 %v136, 4294901760
  %928 = vmatpush.msra.mxu0 %v927
  %v929 = vand.u32 %v135, 4294901760
  %930 = vmatpush.msra.mxu0 %v929
  %v931 = vand.u32 %v134, 4294901760
  %932 = vmatpush.msra.mxu0 %v931
  %v933 = vand.u32 %v133, 4294901760
  %934 = vmatpush.msra.mxu0 %v933
  %v935 = vand.u32 %v132, 4294901760
  %936 = vmatpush.msra.mxu0 %v935
  %v937 = vand.u32 %v131, 4294901760
  %938 = vmatpush.msra.mxu0 %v937
  %v939 = vand.u32 %v130, 4294901760
  %940 = vmatpush.msra.mxu0 %v939
  %v941 = vand.u32 %v129, 4294901760
  %942 = vmatpush.msra.mxu0 %v941
  %v943 = vand.u32 %v261, 4294901760
  %944 = vmatmul.f32.gmra.mxu0 %v943
  %v945 = vpop.f32.mrf.mxu0
  %v946 = vadd.f32 %v909, %v945
  %947 = vdwg.mxu0
  %v948 = vand.u32 %v225, 4294901760
  %949 = vmatpush.msra.mxu0 %v948
  %v950 = vand.u32 %v224, 4294901760
  %951 = vmatpush.msra.mxu0 %v950
  %v952 = vand.u32 %v223, 4294901760
  %953 = vmatpush.msra.mxu0 %v952
  %v954 = vand.u32 %v222, 4294901760
  %955 = vmatpush.msra.mxu0 %v954
  %v956 = vand.u32 %v221, 4294901760
  %957 = vmatpush.msra.mxu0 %v956
  %v958 = vand.u32 %v220, 4294901760
  %959 = vmatpush.msra.mxu0 %v958
  %v960 = vand.u32 %v219, 4294901760
  %961 = vmatpush.msra.mxu0 %v960
  %v962 = vand.u32 %v218, 4294901760
  %963 = vmatpush.msra.mxu0 %v962
  %v964 = vand.u32 %v217, 4294901760
  %965 = vmatpush.msra.mxu0 %v964
  %v966 = vand.u32 %v216, 4294901760
  %967 = vmatpush.msra.mxu0 %v966
  %v968 = vand.u32 %v215, 4294901760
  %969 = vmatpush.msra.mxu0 %v968
  %v970 = vand.u32 %v214, 4294901760
  %971 = vmatpush.msra.mxu0 %v970
  %v972 = vand.u32 %v213, 4294901760
  %973 = vmatpush.msra.mxu0 %v972
  %v974 = vand.u32 %v212, 4294901760
  %975 = vmatpush.msra.mxu0 %v974
  %v976 = vand.u32 %v211, 4294901760
  %977 = vmatpush.msra.mxu0 %v976
  %v978 = vand.u32 %v210, 4294901760
  %979 = vmatpush.msra.mxu0 %v978
  %v980 = vand.u32 %v260, 4294901760
  %v981 = vsub.f32 %v260, %v980
  %v982 = vand.u32 %v981, 4294901760
  %v983 = vsub.f32 %v981, %v982
  %v984 = vand.u32 %v983, 4294901760
  %985 = vmatmul.f32.gmra.mxu0 %v984
  %v986 = vpop.f32.mrf.mxu0
  %v987 = vadd.f32 0.0, %v986
  %988 = vdwg.mxu0
  %v989 = vand.u32 %v225, 4294901760
  %v990 = vsub.f32 %v225, %v989
  %v991 = vand.u32 %v990, 4294901760
  %v992 = vsub.f32 %v990, %v991
  %v993 = vand.u32 %v992, 4294901760
  %994 = vmatpush.msra.mxu0 %v993
  %v995 = vand.u32 %v224, 4294901760
  %v996 = vsub.f32 %v224, %v995
  %v997 = vand.u32 %v996, 4294901760
  %v998 = vsub.f32 %v996, %v997
  %v999 = vand.u32 %v998, 4294901760
  %1000 = vmatpush.msra.mxu0 %v999
  %v1001 = vand.u32 %v223, 4294901760
  %v1002 = vsub.f32 %v223, %v1001
  %v1003 = vand.u32 %v1002, 4294901760
  %v1004 = vsub.f32 %v1002, %v1003
  %v1005 = vand.u32 %v1004, 4294901760
  %1006 = vmatpush.msra.mxu0 %v1005
  %v1007 = vand.u32 %v222, 4294901760
  %v1008 = vsub.f32 %v222, %v1007
  %v1009 = vand.u32 %v1008, 4294901760
  %v1010 = vsub.f32 %v1008, %v1009
  %v1011 = vand.u32 %v1010, 4294901760
  %1012 = vmatpush.msra.mxu0 %v1011
  %v1013 = vand.u32 %v221, 4294901760
  %v1014 = vsub.f32 %v221, %v1013
  %v1015 = vand.u32 %v1014, 4294901760
  %v1016 = vsub.f32 %v1014, %v1015
  %v1017 = vand.u32 %v1016, 4294901760
  %1018 = vmatpush.msra.mxu0 %v1017
  %v1019 = vand.u32 %v220, 4294901760
  %v1020 = vsub.f32 %v220, %v1019
  %v1021 = vand.u32 %v1020, 4294901760
  %v1022 = vsub.f32 %v1020, %v1021
  %v1023 = vand.u32 %v1022, 4294901760
  %1024 = vmatpush.msra.mxu0 %v1023
  %v1025 = vand.u32 %v219, 4294901760
  %v1026 = vsub.f32 %v219, %v1025
  %v1027 = vand.u32 %v1026, 4294901760
  %v1028 = vsub.f32 %v1026, %v1027
  %v1029 = vand.u32 %v1028, 4294901760
  %1030 = vmatpush.msra.mxu0 %v1029
  %v1031 = vand.u32 %v218, 4294901760
  %v1032 = vsub.f32 %v218, %v1031
  %v1033 = vand.u32 %v1032, 4294901760
  %v1034 = vsub.f32 %v1032, %v1033
  %v1035 = vand.u32 %v1034, 4294901760
  %1036 = vmatpush.msra.mxu0 %v1035
  %v1037 = vand.u32 %v217, 4294901760
  %v1038 = vsub.f32 %v217, %v1037
  %v1039 = vand.u32 %v1038, 4294901760
  %v1040 = vsub.f32 %v1038, %v1039
  %v1041 = vand.u32 %v1040, 4294901760
  %1042 = vmatpush.msra.mxu0 %v1041
  %v1043 = vand.u32 %v216, 4294901760
  %v1044 = vsub.f32 %v216, %v1043
  %v1045 = vand.u32 %v1044, 4294901760
  %v1046 = vsub.f32 %v1044, %v1045
  %v1047 = vand.u32 %v1046, 4294901760
  %1048 = vmatpush.msra.mxu0 %v1047
  %v1049 = vand.u32 %v215, 4294901760
  %v1050 = vsub.f32 %v215, %v1049
  %v1051 = vand.u32 %v1050, 4294901760
  %v1052 = vsub.f32 %v1050, %v1051
  %v1053 = vand.u32 %v1052, 4294901760
  %1054 = vmatpush.msra.mxu0 %v1053
  %v1055 = vand.u32 %v214, 4294901760
  %v1056 = vsub.f32 %v214, %v1055
  %v1057 = vand.u32 %v1056, 4294901760
  %v1058 = vsub.f32 %v1056, %v1057
  %v1059 = vand.u32 %v1058, 4294901760
  %1060 = vmatpush.msra.mxu0 %v1059
  %v1061 = vand.u32 %v213, 4294901760
  %v1062 = vsub.f32 %v213, %v1061
  %v1063 = vand.u32 %v1062, 4294901760
  %v1064 = vsub.f32 %v1062, %v1063
  %v1065 = vand.u32 %v1064, 4294901760
  %1066 = vmatpush.msra.mxu0 %v1065
  %v1067 = vand.u32 %v212, 4294901760
  %v1068 = vsub.f32 %v212, %v1067
  %v1069 = vand.u32 %v1068, 4294901760
  %v1070 = vsub.f32 %v1068, %v1069
  %v1071 = vand.u32 %v1070, 4294901760
  %1072 = vmatpush.msra.mxu0 %v1071
  %v1073 = vand.u32 %v211, 4294901760
  %v1074 = vsub.f32 %v211, %v1073
  %v1075 = vand.u32 %v1074, 4294901760
  %v1076 = vsub.f32 %v1074, %v1075
  %v1077 = vand.u32 %v1076, 4294901760
  %1078 = vmatpush.msra.mxu0 %v1077
  %v1079 = vand.u32 %v210, 4294901760
  %v1080 = vsub.f32 %v210, %v1079
  %v1081 = vand.u32 %v1080, 4294901760
  %v1082 = vsub.f32 %v1080, %v1081
  %v1083 = vand.u32 %v1082, 4294901760
  %1084 = vmatpush.msra.mxu0 %v1083
  %v1085 = vand.u32 %v260, 4294901760
  %1086 = vmatmul.f32.gmra.mxu0 %v1085
  %v1087 = vpop.f32.mrf.mxu0
  %v1088 = vadd.f32 %v987, %v1087
  %1089 = vdwg.mxu0
  %v1090 = vand.u32 %v225, 4294901760
  %v1091 = vsub.f32 %v225, %v1090
  %1092 = vmatpush.msra.mxu0 %v1091
  %v1093 = vand.u32 %v224, 4294901760
  %v1094 = vsub.f32 %v224, %v1093
  %1095 = vmatpush.msra.mxu0 %v1094
  %v1096 = vand.u32 %v223, 4294901760
  %v1097 = vsub.f32 %v223, %v1096
  %1098 = vmatpush.msra.mxu0 %v1097
  %v1099 = vand.u32 %v222, 4294901760
  %v1100 = vsub.f32 %v222, %v1099
  %1101 = vmatpush.msra.mxu0 %v1100
  %v1102 = vand.u32 %v221, 4294901760
  %v1103 = vsub.f32 %v221, %v1102
  %1104 = vmatpush.msra.mxu0 %v1103
  %v1105 = vand.u32 %v220, 4294901760
  %v1106 = vsub.f32 %v220, %v1105
  %1107 = vmatpush.msra.mxu0 %v1106
  %v1108 = vand.u32 %v219, 4294901760
  %v1109 = vsub.f32 %v219, %v1108
  %1110 = vmatpush.msra.mxu0 %v1109
  %v1111 = vand.u32 %v218, 4294901760
  %v1112 = vsub.f32 %v218, %v1111
  %1113 = vmatpush.msra.mxu0 %v1112
  %v1114 = vand.u32 %v217, 4294901760
  %v1115 = vsub.f32 %v217, %v1114
  %1116 = vmatpush.msra.mxu0 %v1115
  %v1117 = vand.u32 %v216, 4294901760
  %v1118 = vsub.f32 %v216, %v1117
  %1119 = vmatpush.msra.mxu0 %v1118
  %v1120 = vand.u32 %v215, 4294901760
  %v1121 = vsub.f32 %v215, %v1120
  %1122 = vmatpush.msra.mxu0 %v1121
  %v1123 = vand.u32 %v214, 4294901760
  %v1124 = vsub.f32 %v214, %v1123
  %1125 = vmatpush.msra.mxu0 %v1124
  %v1126 = vand.u32 %v213, 4294901760
  %v1127 = vsub.f32 %v213, %v1126
  %1128 = vmatpush.msra.mxu0 %v1127
  %v1129 = vand.u32 %v212, 4294901760
  %v1130 = vsub.f32 %v212, %v1129
  %1131 = vmatpush.msra.mxu0 %v1130
  %v1132 = vand.u32 %v211, 4294901760
  %v1133 = vsub.f32 %v211, %v1132
  %1134 = vmatpush.msra.mxu0 %v1133
  %v1135 = vand.u32 %v210, 4294901760
  %v1136 = vsub.f32 %v210, %v1135
  %1137 = vmatpush.msra.mxu0 %v1136
  %v1138 = vand.u32 %v260, 4294901760
  %v1139 = vsub.f32 %v260, %v1138
  %1140 = vmatmul.f32.gmra.mxu0 %v1139
  %v1141 = vpop.f32.mrf.mxu0
  %v1142 = vadd.f32 %v1088, %v1141
  %1143 = vdwg.mxu0
  %v1144 = vand.u32 %v225, 4294901760
  %1145 = vmatpush.msra.mxu0 %v1144
  %v1146 = vand.u32 %v224, 4294901760
  %1147 = vmatpush.msra.mxu0 %v1146
  %v1148 = vand.u32 %v223, 4294901760
  %1149 = vmatpush.msra.mxu0 %v1148
  %v1150 = vand.u32 %v222, 4294901760
  %1151 = vmatpush.msra.mxu0 %v1150
  %v1152 = vand.u32 %v221, 4294901760
  %1153 = vmatpush.msra.mxu0 %v1152
  %v1154 = vand.u32 %v220, 4294901760
  %1155 = vmatpush.msra.mxu0 %v1154
  %v1156 = vand.u32 %v219, 4294901760
  %1157 = vmatpush.msra.mxu0 %v1156
  %v1158 = vand.u32 %v218, 4294901760
  %1159 = vmatpush.msra.mxu0 %v1158
  %v1160 = vand.u32 %v217, 4294901760
  %1161 = vmatpush.msra.mxu0 %v1160
  %v1162 = vand.u32 %v216, 4294901760
  %1163 = vmatpush.msra.mxu0 %v1162
  %v1164 = vand.u32 %v215, 4294901760
  %1165 = vmatpush.msra.mxu0 %v1164
  %v1166 = vand.u32 %v214, 4294901760
  %1167 = vmatpush.msra.mxu0 %v1166
  %v1168 = vand.u32 %v213, 4294901760
  %1169 = vmatpush.msra.mxu0 %v1168
  %v1170 = vand.u32 %v212, 4294901760
  %1171 = vmatpush.msra.mxu0 %v1170
  %v1172 = vand.u32 %v211, 4294901760
  %1173 = vmatpush.msra.mxu0 %v1172
  %v1174 = vand.u32 %v210, 4294901760
  %1175 = vmatpush.msra.mxu0 %v1174
  %v1176 = vand.u32 %v260, 4294901760
  %v1177 = vsub.f32 %v260, %v1176
  %v1178 = vand.u32 %v1177, 4294901760
  %1179 = vmatmul.f32.gmra.mxu0 %v1178
  %v1180 = vpop.f32.mrf.mxu0
  %v1181 = vadd.f32 %v1142, %v1180
  %1182 = vdwg.mxu0
  %v1183 = vand.u32 %v225, 4294901760
  %v1184 = vsub.f32 %v225, %v1183
  %v1185 = vand.u32 %v1184, 4294901760
  %1186 = vmatpush.msra.mxu0 %v1185
  %v1187 = vand.u32 %v224, 4294901760
  %v1188 = vsub.f32 %v224, %v1187
  %v1189 = vand.u32 %v1188, 4294901760
  %1190 = vmatpush.msra.mxu0 %v1189
  %v1191 = vand.u32 %v223, 4294901760
  %v1192 = vsub.f32 %v223, %v1191
  %v1193 = vand.u32 %v1192, 4294901760
  %1194 = vmatpush.msra.mxu0 %v1193
  %v1195 = vand.u32 %v222, 4294901760
  %v1196 = vsub.f32 %v222, %v1195
  %v1197 = vand.u32 %v1196, 4294901760
  %1198 = vmatpush.msra.mxu0 %v1197
  %v1199 = vand.u32 %v221, 4294901760
  %v1200 = vsub.f32 %v221, %v1199
  %v1201 = vand.u32 %v1200, 4294901760
  %1202 = vmatpush.msra.mxu0 %v1201
  %v1203 = vand.u32 %v220, 4294901760
  %v1204 = vsub.f32 %v220, %v1203
  %v1205 = vand.u32 %v1204, 4294901760
  %1206 = vmatpush.msra.mxu0 %v1205
  %v1207 = vand.u32 %v219, 4294901760
  %v1208 = vsub.f32 %v219, %v1207
  %v1209 = vand.u32 %v1208, 4294901760
  %1210 = vmatpush.msra.mxu0 %v1209
  %v1211 = vand.u32 %v218, 4294901760
  %v1212 = vsub.f32 %v218, %v1211
  %v1213 = vand.u32 %v1212, 4294901760
  %1214 = vmatpush.msra.mxu0 %v1213
  %v1215 = vand.u32 %v217, 4294901760
  %v1216 = vsub.f32 %v217, %v1215
  %v1217 = vand.u32 %v1216, 4294901760
  %1218 = vmatpush.msra.mxu0 %v1217
  %v1219 = vand.u32 %v216, 4294901760
  %v1220 = vsub.f32 %v216, %v1219
  %v1221 = vand.u32 %v1220, 4294901760
  %1222 = vmatpush.msra.mxu0 %v1221
  %v1223 = vand.u32 %v215, 4294901760
  %v1224 = vsub.f32 %v215, %v1223
  %v1225 = vand.u32 %v1224, 4294901760
  %1226 = vmatpush.msra.mxu0 %v1225
  %v1227 = vand.u32 %v214, 4294901760
  %v1228 = vsub.f32 %v214, %v1227
  %v1229 = vand.u32 %v1228, 4294901760
  %1230 = vmatpush.msra.mxu0 %v1229
  %v1231 = vand.u32 %v213, 4294901760
  %v1232 = vsub.f32 %v213, %v1231
  %v1233 = vand.u32 %v1232, 4294901760
  %1234 = vmatpush.msra.mxu0 %v1233
  %v1235 = vand.u32 %v212, 4294901760
  %v1236 = vsub.f32 %v212, %v1235
  %v1237 = vand.u32 %v1236, 4294901760
  %1238 = vmatpush.msra.mxu0 %v1237
  %v1239 = vand.u32 %v211, 4294901760
  %v1240 = vsub.f32 %v211, %v1239
  %v1241 = vand.u32 %v1240, 4294901760
  %1242 = vmatpush.msra.mxu0 %v1241
  %v1243 = vand.u32 %v210, 4294901760
  %v1244 = vsub.f32 %v210, %v1243
  %v1245 = vand.u32 %v1244, 4294901760
  %1246 = vmatpush.msra.mxu0 %v1245
  %v1247 = vand.u32 %v260, 4294901760
  %1248 = vmatmul.f32.gmra.mxu0 %v1247
  %v1249 = vpop.f32.mrf.mxu0
  %v1250 = vadd.f32 %v1181, %v1249
  %1251 = vdwg.mxu0
  %v1252 = vand.u32 %v225, 4294901760
  %1253 = vmatpush.msra.mxu0 %v1252
  %v1254 = vand.u32 %v224, 4294901760
  %1255 = vmatpush.msra.mxu0 %v1254
  %v1256 = vand.u32 %v223, 4294901760
  %1257 = vmatpush.msra.mxu0 %v1256
  %v1258 = vand.u32 %v222, 4294901760
  %1259 = vmatpush.msra.mxu0 %v1258
  %v1260 = vand.u32 %v221, 4294901760
  %1261 = vmatpush.msra.mxu0 %v1260
  %v1262 = vand.u32 %v220, 4294901760
  %1263 = vmatpush.msra.mxu0 %v1262
  %v1264 = vand.u32 %v219, 4294901760
  %1265 = vmatpush.msra.mxu0 %v1264
  %v1266 = vand.u32 %v218, 4294901760
  %1267 = vmatpush.msra.mxu0 %v1266
  %v1268 = vand.u32 %v217, 4294901760
  %1269 = vmatpush.msra.mxu0 %v1268
  %v1270 = vand.u32 %v216, 4294901760
  %1271 = vmatpush.msra.mxu0 %v1270
  %v1272 = vand.u32 %v215, 4294901760
  %1273 = vmatpush.msra.mxu0 %v1272
  %v1274 = vand.u32 %v214, 4294901760
  %1275 = vmatpush.msra.mxu0 %v1274
  %v1276 = vand.u32 %v213, 4294901760
  %1277 = vmatpush.msra.mxu0 %v1276
  %v1278 = vand.u32 %v212, 4294901760
  %1279 = vmatpush.msra.mxu0 %v1278
  %v1280 = vand.u32 %v211, 4294901760
  %1281 = vmatpush.msra.mxu0 %v1280
  %v1282 = vand.u32 %v210, 4294901760
  %1283 = vmatpush.msra.mxu0 %v1282
  %v1284 = vand.u32 %v260, 4294901760
  %1285 = vmatmul.f32.gmra.mxu0 %v1284
  %v1286 = vpop.f32.mrf.mxu0
  %v1287 = vadd.f32 %v1250, %v1286
  %1288 = vdwg.mxu0
  %v1289 = vand.u32 %v241, 4294901760
  %1290 = vmatpush.msra.mxu0 %v1289
  %v1291 = vand.u32 %v240, 4294901760
  %1292 = vmatpush.msra.mxu0 %v1291
  %v1293 = vand.u32 %v239, 4294901760
  %1294 = vmatpush.msra.mxu0 %v1293
  %v1295 = vand.u32 %v238, 4294901760
  %1296 = vmatpush.msra.mxu0 %v1295
  %v1297 = vand.u32 %v237, 4294901760
  %1298 = vmatpush.msra.mxu0 %v1297
  %v1299 = vand.u32 %v236, 4294901760
  %1300 = vmatpush.msra.mxu0 %v1299
  %v1301 = vand.u32 %v235, 4294901760
  %1302 = vmatpush.msra.mxu0 %v1301
  %v1303 = vand.u32 %v234, 4294901760
  %1304 = vmatpush.msra.mxu0 %v1303
  %v1305 = vand.u32 %v233, 4294901760
  %1306 = vmatpush.msra.mxu0 %v1305
  %v1307 = vand.u32 %v232, 4294901760
  %1308 = vmatpush.msra.mxu0 %v1307
  %v1309 = vand.u32 %v231, 4294901760
  %1310 = vmatpush.msra.mxu0 %v1309
  %v1311 = vand.u32 %v230, 4294901760
  %1312 = vmatpush.msra.mxu0 %v1311
  %v1313 = vand.u32 %v229, 4294901760
  %1314 = vmatpush.msra.mxu0 %v1313
  %v1315 = vand.u32 %v228, 4294901760
  %1316 = vmatpush.msra.mxu0 %v1315
  %v1317 = vand.u32 %v227, 4294901760
  %1318 = vmatpush.msra.mxu0 %v1317
  %v1319 = vand.u32 %v226, 4294901760
  %1320 = vmatpush.msra.mxu0 %v1319
  %v1321 = vand.u32 %v261, 4294901760
  %v1322 = vsub.f32 %v261, %v1321
  %v1323 = vand.u32 %v1322, 4294901760
  %v1324 = vsub.f32 %v1322, %v1323
  %v1325 = vand.u32 %v1324, 4294901760
  %1326 = vmatmul.f32.gmra.mxu0 %v1325
  %v1327 = vpop.f32.mrf.mxu0
  %v1328 = vadd.f32 %v1287, %v1327
  %1329 = vdwg.mxu0
  %v1330 = vand.u32 %v241, 4294901760
  %v1331 = vsub.f32 %v241, %v1330
  %v1332 = vand.u32 %v1331, 4294901760
  %v1333 = vsub.f32 %v1331, %v1332
  %v1334 = vand.u32 %v1333, 4294901760
  %1335 = vmatpush.msra.mxu0 %v1334
  %v1336 = vand.u32 %v240, 4294901760
  %v1337 = vsub.f32 %v240, %v1336
  %v1338 = vand.u32 %v1337, 4294901760
  %v1339 = vsub.f32 %v1337, %v1338
  %v1340 = vand.u32 %v1339, 4294901760
  %1341 = vmatpush.msra.mxu0 %v1340
  %v1342 = vand.u32 %v239, 4294901760
  %v1343 = vsub.f32 %v239, %v1342
  %v1344 = vand.u32 %v1343, 4294901760
  %v1345 = vsub.f32 %v1343, %v1344
  %v1346 = vand.u32 %v1345, 4294901760
  %1347 = vmatpush.msra.mxu0 %v1346
  %v1348 = vand.u32 %v238, 4294901760
  %v1349 = vsub.f32 %v238, %v1348
  %v1350 = vand.u32 %v1349, 4294901760
  %v1351 = vsub.f32 %v1349, %v1350
  %v1352 = vand.u32 %v1351, 4294901760
  %1353 = vmatpush.msra.mxu0 %v1352
  %v1354 = vand.u32 %v237, 4294901760
  %v1355 = vsub.f32 %v237, %v1354
  %v1356 = vand.u32 %v1355, 4294901760
  %v1357 = vsub.f32 %v1355, %v1356
  %v1358 = vand.u32 %v1357, 4294901760
  %1359 = vmatpush.msra.mxu0 %v1358
  %v1360 = vand.u32 %v236, 4294901760
  %v1361 = vsub.f32 %v236, %v1360
  %v1362 = vand.u32 %v1361, 4294901760
  %v1363 = vsub.f32 %v1361, %v1362
  %v1364 = vand.u32 %v1363, 4294901760
  %1365 = vmatpush.msra.mxu0 %v1364
  %v1366 = vand.u32 %v235, 4294901760
  %v1367 = vsub.f32 %v235, %v1366
  %v1368 = vand.u32 %v1367, 4294901760
  %v1369 = vsub.f32 %v1367, %v1368
  %v1370 = vand.u32 %v1369, 4294901760
  %1371 = vmatpush.msra.mxu0 %v1370
  %v1372 = vand.u32 %v234, 4294901760
  %v1373 = vsub.f32 %v234, %v1372
  %v1374 = vand.u32 %v1373, 4294901760
  %v1375 = vsub.f32 %v1373, %v1374
  %v1376 = vand.u32 %v1375, 4294901760
  %1377 = vmatpush.msra.mxu0 %v1376
  %v1378 = vand.u32 %v233, 4294901760
  %v1379 = vsub.f32 %v233, %v1378
  %v1380 = vand.u32 %v1379, 4294901760
  %v1381 = vsub.f32 %v1379, %v1380
  %v1382 = vand.u32 %v1381, 4294901760
  %1383 = vmatpush.msra.mxu0 %v1382
  %v1384 = vand.u32 %v232, 4294901760
  %v1385 = vsub.f32 %v232, %v1384
  %v1386 = vand.u32 %v1385, 4294901760
  %v1387 = vsub.f32 %v1385, %v1386
  %v1388 = vand.u32 %v1387, 4294901760
  %1389 = vmatpush.msra.mxu0 %v1388
  %v1390 = vand.u32 %v231, 4294901760
  %v1391 = vsub.f32 %v231, %v1390
  %v1392 = vand.u32 %v1391, 4294901760
  %v1393 = vsub.f32 %v1391, %v1392
  %v1394 = vand.u32 %v1393, 4294901760
  %1395 = vmatpush.msra.mxu0 %v1394
  %v1396 = vand.u32 %v230, 4294901760
  %v1397 = vsub.f32 %v230, %v1396
  %v1398 = vand.u32 %v1397, 4294901760
  %v1399 = vsub.f32 %v1397, %v1398
  %v1400 = vand.u32 %v1399, 4294901760
  %1401 = vmatpush.msra.mxu0 %v1400
  %v1402 = vand.u32 %v229, 4294901760
  %v1403 = vsub.f32 %v229, %v1402
  %v1404 = vand.u32 %v1403, 4294901760
  %v1405 = vsub.f32 %v1403, %v1404
  %v1406 = vand.u32 %v1405, 4294901760
  %1407 = vmatpush.msra.mxu0 %v1406
  %v1408 = vand.u32 %v228, 4294901760
  %v1409 = vsub.f32 %v228, %v1408
  %v1410 = vand.u32 %v1409, 4294901760
  %v1411 = vsub.f32 %v1409, %v1410
  %v1412 = vand.u32 %v1411, 4294901760
  %1413 = vmatpush.msra.mxu0 %v1412
  %v1414 = vand.u32 %v227, 4294901760
  %v1415 = vsub.f32 %v227, %v1414
  %v1416 = vand.u32 %v1415, 4294901760
  %v1417 = vsub.f32 %v1415, %v1416
  %v1418 = vand.u32 %v1417, 4294901760
  %1419 = vmatpush.msra.mxu0 %v1418
  %v1420 = vand.u32 %v226, 4294901760
  %v1421 = vsub.f32 %v226, %v1420
  %v1422 = vand.u32 %v1421, 4294901760
  %v1423 = vsub.f32 %v1421, %v1422
  %v1424 = vand.u32 %v1423, 4294901760
  %1425 = vmatpush.msra.mxu0 %v1424
  %v1426 = vand.u32 %v261, 4294901760
  %1427 = vmatmul.f32.gmra.mxu0 %v1426
  %v1428 = vpop.f32.mrf.mxu0
  %v1429 = vadd.f32 %v1328, %v1428
  %1430 = vdwg.mxu0
  %v1431 = vand.u32 %v241, 4294901760
  %v1432 = vsub.f32 %v241, %v1431
  %1433 = vmatpush.msra.mxu0 %v1432
  %v1434 = vand.u32 %v240, 4294901760
  %v1435 = vsub.f32 %v240, %v1434
  %1436 = vmatpush.msra.mxu0 %v1435
  %v1437 = vand.u32 %v239, 4294901760
  %v1438 = vsub.f32 %v239, %v1437
  %1439 = vmatpush.msra.mxu0 %v1438
  %v1440 = vand.u32 %v238, 4294901760
  %v1441 = vsub.f32 %v238, %v1440
  %1442 = vmatpush.msra.mxu0 %v1441
  %v1443 = vand.u32 %v237, 4294901760
  %v1444 = vsub.f32 %v237, %v1443
  %1445 = vmatpush.msra.mxu0 %v1444
  %v1446 = vand.u32 %v236, 4294901760
  %v1447 = vsub.f32 %v236, %v1446
  %1448 = vmatpush.msra.mxu0 %v1447
  %v1449 = vand.u32 %v235, 4294901760
  %v1450 = vsub.f32 %v235, %v1449
  %1451 = vmatpush.msra.mxu0 %v1450
  %v1452 = vand.u32 %v234, 4294901760
  %v1453 = vsub.f32 %v234, %v1452
  %1454 = vmatpush.msra.mxu0 %v1453
  %v1455 = vand.u32 %v233, 4294901760
  %v1456 = vsub.f32 %v233, %v1455
  %1457 = vmatpush.msra.mxu0 %v1456
  %v1458 = vand.u32 %v232, 4294901760
  %v1459 = vsub.f32 %v232, %v1458
  %1460 = vmatpush.msra.mxu0 %v1459
  %v1461 = vand.u32 %v231, 4294901760
  %v1462 = vsub.f32 %v231, %v1461
  %1463 = vmatpush.msra.mxu0 %v1462
  %v1464 = vand.u32 %v230, 4294901760
  %v1465 = vsub.f32 %v230, %v1464
  %1466 = vmatpush.msra.mxu0 %v1465
  %v1467 = vand.u32 %v229, 4294901760
  %v1468 = vsub.f32 %v229, %v1467
  %1469 = vmatpush.msra.mxu0 %v1468
  %v1470 = vand.u32 %v228, 4294901760
  %v1471 = vsub.f32 %v228, %v1470
  %1472 = vmatpush.msra.mxu0 %v1471
  %v1473 = vand.u32 %v227, 4294901760
  %v1474 = vsub.f32 %v227, %v1473
  %1475 = vmatpush.msra.mxu0 %v1474
  %v1476 = vand.u32 %v226, 4294901760
  %v1477 = vsub.f32 %v226, %v1476
  %1478 = vmatpush.msra.mxu0 %v1477
  %v1479 = vand.u32 %v261, 4294901760
  %v1480 = vsub.f32 %v261, %v1479
  %1481 = vmatmul.f32.gmra.mxu0 %v1480
  %v1482 = vpop.f32.mrf.mxu0
  %v1483 = vadd.f32 %v1429, %v1482
  %1484 = vdwg.mxu0
  %v1485 = vand.u32 %v241, 4294901760
  %1486 = vmatpush.msra.mxu0 %v1485
  %v1487 = vand.u32 %v240, 4294901760
  %1488 = vmatpush.msra.mxu0 %v1487
  %v1489 = vand.u32 %v239, 4294901760
  %1490 = vmatpush.msra.mxu0 %v1489
  %v1491 = vand.u32 %v238, 4294901760
  %1492 = vmatpush.msra.mxu0 %v1491
  %v1493 = vand.u32 %v237, 4294901760
  %1494 = vmatpush.msra.mxu0 %v1493
  %v1495 = vand.u32 %v236, 4294901760
  %1496 = vmatpush.msra.mxu0 %v1495
  %v1497 = vand.u32 %v235, 4294901760
  %1498 = vmatpush.msra.mxu0 %v1497
  %v1499 = vand.u32 %v234, 4294901760
  %1500 = vmatpush.msra.mxu0 %v1499
  %v1501 = vand.u32 %v233, 4294901760
  %1502 = vmatpush.msra.mxu0 %v1501
  %v1503 = vand.u32 %v232, 4294901760
  %1504 = vmatpush.msra.mxu0 %v1503
  %v1505 = vand.u32 %v231, 4294901760
  %1506 = vmatpush.msra.mxu0 %v1505
  %v1507 = vand.u32 %v230, 4294901760
  %1508 = vmatpush.msra.mxu0 %v1507
  %v1509 = vand.u32 %v229, 4294901760
  %1510 = vmatpush.msra.mxu0 %v1509
  %v1511 = vand.u32 %v228, 4294901760
  %1512 = vmatpush.msra.mxu0 %v1511
  %v1513 = vand.u32 %v227, 4294901760
  %1514 = vmatpush.msra.mxu0 %v1513
  %v1515 = vand.u32 %v226, 4294901760
  %1516 = vmatpush.msra.mxu0 %v1515
  %v1517 = vand.u32 %v261, 4294901760
  %v1518 = vsub.f32 %v261, %v1517
  %v1519 = vand.u32 %v1518, 4294901760
  %1520 = vmatmul.f32.gmra.mxu0 %v1519
  %v1521 = vpop.f32.mrf.mxu0
  %v1522 = vadd.f32 %v1483, %v1521
  %1523 = vdwg.mxu0
  %v1524 = vand.u32 %v241, 4294901760
  %v1525 = vsub.f32 %v241, %v1524
  %v1526 = vand.u32 %v1525, 4294901760
  %1527 = vmatpush.msra.mxu0 %v1526
  %v1528 = vand.u32 %v240, 4294901760
  %v1529 = vsub.f32 %v240, %v1528
  %v1530 = vand.u32 %v1529, 4294901760
  %1531 = vmatpush.msra.mxu0 %v1530
  %v1532 = vand.u32 %v239, 4294901760
  %v1533 = vsub.f32 %v239, %v1532
  %v1534 = vand.u32 %v1533, 4294901760
  %1535 = vmatpush.msra.mxu0 %v1534
  %v1536 = vand.u32 %v238, 4294901760
  %v1537 = vsub.f32 %v238, %v1536
  %v1538 = vand.u32 %v1537, 4294901760
  %1539 = vmatpush.msra.mxu0 %v1538
  %v1540 = vand.u32 %v237, 4294901760
  %v1541 = vsub.f32 %v237, %v1540
  %v1542 = vand.u32 %v1541, 4294901760
  %1543 = vmatpush.msra.mxu0 %v1542
  %v1544 = vand.u32 %v236, 4294901760
  %v1545 = vsub.f32 %v236, %v1544
  %v1546 = vand.u32 %v1545, 4294901760
  %1547 = vmatpush.msra.mxu0 %v1546
  %v1548 = vand.u32 %v235, 4294901760
  %v1549 = vsub.f32 %v235, %v1548
  %v1550 = vand.u32 %v1549, 4294901760
  %1551 = vmatpush.msra.mxu0 %v1550
  %v1552 = vand.u32 %v234, 4294901760
  %v1553 = vsub.f32 %v234, %v1552
  %v1554 = vand.u32 %v1553, 4294901760
  %1555 = vmatpush.msra.mxu0 %v1554
  %v1556 = vand.u32 %v233, 4294901760
  %v1557 = vsub.f32 %v233, %v1556
  %v1558 = vand.u32 %v1557, 4294901760
  %1559 = vmatpush.msra.mxu0 %v1558
  %v1560 = vand.u32 %v232, 4294901760
  %v1561 = vsub.f32 %v232, %v1560
  %v1562 = vand.u32 %v1561, 4294901760
  %1563 = vmatpush.msra.mxu0 %v1562
  %v1564 = vand.u32 %v231, 4294901760
  %v1565 = vsub.f32 %v231, %v1564
  %v1566 = vand.u32 %v1565, 4294901760
  %1567 = vmatpush.msra.mxu0 %v1566
  %v1568 = vand.u32 %v230, 4294901760
  %v1569 = vsub.f32 %v230, %v1568
  %v1570 = vand.u32 %v1569, 4294901760
  %1571 = vmatpush.msra.mxu0 %v1570
  %v1572 = vand.u32 %v229, 4294901760
  %v1573 = vsub.f32 %v229, %v1572
  %v1574 = vand.u32 %v1573, 4294901760
  %1575 = vmatpush.msra.mxu0 %v1574
  %v1576 = vand.u32 %v228, 4294901760
  %v1577 = vsub.f32 %v228, %v1576
  %v1578 = vand.u32 %v1577, 4294901760
  %1579 = vmatpush.msra.mxu0 %v1578
  %v1580 = vand.u32 %v227, 4294901760
  %v1581 = vsub.f32 %v227, %v1580
  %v1582 = vand.u32 %v1581, 4294901760
  %1583 = vmatpush.msra.mxu0 %v1582
  %v1584 = vand.u32 %v226, 4294901760
  %v1585 = vsub.f32 %v226, %v1584
  %v1586 = vand.u32 %v1585, 4294901760
  %1587 = vmatpush.msra.mxu0 %v1586
  %v1588 = vand.u32 %v261, 4294901760
  %1589 = vmatmul.f32.gmra.mxu0 %v1588
  %v1590 = vpop.f32.mrf.mxu0
  %v1591 = vadd.f32 %v1522, %v1590
  %1592 = vdwg.mxu0
  %v1593 = vand.u32 %v241, 4294901760
  %1594 = vmatpush.msra.mxu0 %v1593
  %v1595 = vand.u32 %v240, 4294901760
  %1596 = vmatpush.msra.mxu0 %v1595
  %v1597 = vand.u32 %v239, 4294901760
  %1598 = vmatpush.msra.mxu0 %v1597
  %v1599 = vand.u32 %v238, 4294901760
  %1600 = vmatpush.msra.mxu0 %v1599
  %v1601 = vand.u32 %v237, 4294901760
  %1602 = vmatpush.msra.mxu0 %v1601
  %v1603 = vand.u32 %v236, 4294901760
  %1604 = vmatpush.msra.mxu0 %v1603
  %v1605 = vand.u32 %v235, 4294901760
  %1606 = vmatpush.msra.mxu0 %v1605
  %v1607 = vand.u32 %v234, 4294901760
  %1608 = vmatpush.msra.mxu0 %v1607
  %v1609 = vand.u32 %v233, 4294901760
  %1610 = vmatpush.msra.mxu0 %v1609
  %v1611 = vand.u32 %v232, 4294901760
  %1612 = vmatpush.msra.mxu0 %v1611
  %v1613 = vand.u32 %v231, 4294901760
  %1614 = vmatpush.msra.mxu0 %v1613
  %v1615 = vand.u32 %v230, 4294901760
  %1616 = vmatpush.msra.mxu0 %v1615
  %v1617 = vand.u32 %v229, 4294901760
  %1618 = vmatpush.msra.mxu0 %v1617
  %v1619 = vand.u32 %v228, 4294901760
  %1620 = vmatpush.msra.mxu0 %v1619
  %v1621 = vand.u32 %v227, 4294901760
  %1622 = vmatpush.msra.mxu0 %v1621
  %v1623 = vand.u32 %v226, 4294901760
  %1624 = vmatpush.msra.mxu0 %v1623
  %v1625 = vand.u32 %v261, 4294901760
  %1626 = vmatmul.f32.gmra.mxu0 %v1625
  %v1627 = vpop.f32.mrf.mxu0
  %v1628 = vadd.f32 %v1591, %v1627
  %1629 = vdwg.mxu0
  %v1630 = vand.u32 %v128, 4294901760
  %1631 = vmatpush.msra.mxu0 %v1630
  %v1632 = vand.u32 %v127, 4294901760
  %1633 = vmatpush.msra.mxu0 %v1632
  %v1634 = vand.u32 %v126, 4294901760
  %1635 = vmatpush.msra.mxu0 %v1634
  %v1636 = vand.u32 %v125, 4294901760
  %1637 = vmatpush.msra.mxu0 %v1636
  %v1638 = vand.u32 %v124, 4294901760
  %1639 = vmatpush.msra.mxu0 %v1638
  %v1640 = vand.u32 %v123, 4294901760
  %1641 = vmatpush.msra.mxu0 %v1640
  %v1642 = vand.u32 %v122, 4294901760
  %1643 = vmatpush.msra.mxu0 %v1642
  %v1644 = vand.u32 %v121, 4294901760
  %1645 = vmatpush.msra.mxu0 %v1644
  %v1646 = vand.u32 %v120, 4294901760
  %1647 = vmatpush.msra.mxu0 %v1646
  %v1648 = vand.u32 %v119, 4294901760
  %1649 = vmatpush.msra.mxu0 %v1648
  %v1650 = vand.u32 %v118, 4294901760
  %1651 = vmatpush.msra.mxu0 %v1650
  %v1652 = vand.u32 %v117, 4294901760
  %1653 = vmatpush.msra.mxu0 %v1652
  %v1654 = vand.u32 %v116, 4294901760
  %1655 = vmatpush.msra.mxu0 %v1654
  %v1656 = vand.u32 %v115, 4294901760
  %1657 = vmatpush.msra.mxu0 %v1656
  %v1658 = vand.u32 %v114, 4294901760
  %1659 = vmatpush.msra.mxu0 %v1658
  %v1660 = vand.u32 %v113, 4294901760
  %1661 = vmatpush.msra.mxu0 %v1660
  %v1662 = vand.u32 %v264, 4294901760
  %v1663 = vsub.f32 %v264, %v1662
  %v1664 = vand.u32 %v1663, 4294901760
  %v1665 = vsub.f32 %v1663, %v1664
  %v1666 = vand.u32 %v1665, 4294901760
  %1667 = vmatmul.f32.gmra.mxu0 %v1666
  %v1668 = vpop.f32.mrf.mxu0
  %v1669 = vadd.f32 0.0, %v1668
  %1670 = vdwg.mxu0
  %v1671 = vand.u32 %v128, 4294901760
  %v1672 = vsub.f32 %v128, %v1671
  %v1673 = vand.u32 %v1672, 4294901760
  %v1674 = vsub.f32 %v1672, %v1673
  %v1675 = vand.u32 %v1674, 4294901760
  %1676 = vmatpush.msra.mxu0 %v1675
  %v1677 = vand.u32 %v127, 4294901760
  %v1678 = vsub.f32 %v127, %v1677
  %v1679 = vand.u32 %v1678, 4294901760
  %v1680 = vsub.f32 %v1678, %v1679
  %v1681 = vand.u32 %v1680, 4294901760
  %1682 = vmatpush.msra.mxu0 %v1681
  %v1683 = vand.u32 %v126, 4294901760
  %v1684 = vsub.f32 %v126, %v1683
  %v1685 = vand.u32 %v1684, 4294901760
  %v1686 = vsub.f32 %v1684, %v1685
  %v1687 = vand.u32 %v1686, 4294901760
  %1688 = vmatpush.msra.mxu0 %v1687
  %v1689 = vand.u32 %v125, 4294901760
  %v1690 = vsub.f32 %v125, %v1689
  %v1691 = vand.u32 %v1690, 4294901760
  %v1692 = vsub.f32 %v1690, %v1691
  %v1693 = vand.u32 %v1692, 4294901760
  %1694 = vmatpush.msra.mxu0 %v1693
  %v1695 = vand.u32 %v124, 4294901760
  %v1696 = vsub.f32 %v124, %v1695
  %v1697 = vand.u32 %v1696, 4294901760
  %v1698 = vsub.f32 %v1696, %v1697
  %v1699 = vand.u32 %v1698, 4294901760
  %1700 = vmatpush.msra.mxu0 %v1699
  %v1701 = vand.u32 %v123, 4294901760
  %v1702 = vsub.f32 %v123, %v1701
  %v1703 = vand.u32 %v1702, 4294901760
  %v1704 = vsub.f32 %v1702, %v1703
  %v1705 = vand.u32 %v1704, 4294901760
  %1706 = vmatpush.msra.mxu0 %v1705
  %v1707 = vand.u32 %v122, 4294901760
  %v1708 = vsub.f32 %v122, %v1707
  %v1709 = vand.u32 %v1708, 4294901760
  %v1710 = vsub.f32 %v1708, %v1709
  %v1711 = vand.u32 %v1710, 4294901760
  %1712 = vmatpush.msra.mxu0 %v1711
  %v1713 = vand.u32 %v121, 4294901760
  %v1714 = vsub.f32 %v121, %v1713
  %v1715 = vand.u32 %v1714, 4294901760
  %v1716 = vsub.f32 %v1714, %v1715
  %v1717 = vand.u32 %v1716, 4294901760
  %1718 = vmatpush.msra.mxu0 %v1717
  %v1719 = vand.u32 %v120, 4294901760
  %v1720 = vsub.f32 %v120, %v1719
  %v1721 = vand.u32 %v1720, 4294901760
  %v1722 = vsub.f32 %v1720, %v1721
  %v1723 = vand.u32 %v1722, 4294901760
  %1724 = vmatpush.msra.mxu0 %v1723
  %v1725 = vand.u32 %v119, 4294901760
  %v1726 = vsub.f32 %v119, %v1725
  %v1727 = vand.u32 %v1726, 4294901760
  %v1728 = vsub.f32 %v1726, %v1727
  %v1729 = vand.u32 %v1728, 4294901760
  %1730 = vmatpush.msra.mxu0 %v1729
  %v1731 = vand.u32 %v118, 4294901760
  %v1732 = vsub.f32 %v118, %v1731
  %v1733 = vand.u32 %v1732, 4294901760
  %v1734 = vsub.f32 %v1732, %v1733
  %v1735 = vand.u32 %v1734, 4294901760
  %1736 = vmatpush.msra.mxu0 %v1735
  %v1737 = vand.u32 %v117, 4294901760
  %v1738 = vsub.f32 %v117, %v1737
  %v1739 = vand.u32 %v1738, 4294901760
  %v1740 = vsub.f32 %v1738, %v1739
  %v1741 = vand.u32 %v1740, 4294901760
  %1742 = vmatpush.msra.mxu0 %v1741
  %v1743 = vand.u32 %v116, 4294901760
  %v1744 = vsub.f32 %v116, %v1743
  %v1745 = vand.u32 %v1744, 4294901760
  %v1746 = vsub.f32 %v1744, %v1745
  %v1747 = vand.u32 %v1746, 4294901760
  %1748 = vmatpush.msra.mxu0 %v1747
  %v1749 = vand.u32 %v115, 4294901760
  %v1750 = vsub.f32 %v115, %v1749
  %v1751 = vand.u32 %v1750, 4294901760
  %v1752 = vsub.f32 %v1750, %v1751
  %v1753 = vand.u32 %v1752, 4294901760
  %1754 = vmatpush.msra.mxu0 %v1753
  %v1755 = vand.u32 %v114, 4294901760
  %v1756 = vsub.f32 %v114, %v1755
  %v1757 = vand.u32 %v1756, 4294901760
  %v1758 = vsub.f32 %v1756, %v1757
  %v1759 = vand.u32 %v1758, 4294901760
  %1760 = vmatpush.msra.mxu0 %v1759
  %v1761 = vand.u32 %v113, 4294901760
  %v1762 = vsub.f32 %v113, %v1761
  %v1763 = vand.u32 %v1762, 4294901760
  %v1764 = vsub.f32 %v1762, %v1763
  %v1765 = vand.u32 %v1764, 4294901760
  %1766 = vmatpush.msra.mxu0 %v1765
  %v1767 = vand.u32 %v264, 4294901760
  %1768 = vmatmul.f32.gmra.mxu0 %v1767
  %v1769 = vpop.f32.mrf.mxu0
  %v1770 = vadd.f32 %v1669, %v1769
  %1771 = vdwg.mxu0
  %v1772 = vand.u32 %v128, 4294901760
  %v1773 = vsub.f32 %v128, %v1772
  %1774 = vmatpush.msra.mxu0 %v1773
  %v1775 = vand.u32 %v127, 4294901760
  %v1776 = vsub.f32 %v127, %v1775
  %1777 = vmatpush.msra.mxu0 %v1776
  %v1778 = vand.u32 %v126, 4294901760
  %v1779 = vsub.f32 %v126, %v1778
  %1780 = vmatpush.msra.mxu0 %v1779
  %v1781 = vand.u32 %v125, 4294901760
  %v1782 = vsub.f32 %v125, %v1781
  %1783 = vmatpush.msra.mxu0 %v1782
  %v1784 = vand.u32 %v124, 4294901760
  %v1785 = vsub.f32 %v124, %v1784
  %1786 = vmatpush.msra.mxu0 %v1785
  %v1787 = vand.u32 %v123, 4294901760
  %v1788 = vsub.f32 %v123, %v1787
  %1789 = vmatpush.msra.mxu0 %v1788
  %v1790 = vand.u32 %v122, 4294901760
  %v1791 = vsub.f32 %v122, %v1790
  %1792 = vmatpush.msra.mxu0 %v1791
  %v1793 = vand.u32 %v121, 4294901760
  %v1794 = vsub.f32 %v121, %v1793
  %1795 = vmatpush.msra.mxu0 %v1794
  %v1796 = vand.u32 %v120, 4294901760
  %v1797 = vsub.f32 %v120, %v1796
  %1798 = vmatpush.msra.mxu0 %v1797
  %v1799 = vand.u32 %v119, 4294901760
  %v1800 = vsub.f32 %v119, %v1799
  %1801 = vmatpush.msra.mxu0 %v1800
  %v1802 = vand.u32 %v118, 4294901760
  %v1803 = vsub.f32 %v118, %v1802
  %1804 = vmatpush.msra.mxu0 %v1803
  %v1805 = vand.u32 %v117, 4294901760
  %v1806 = vsub.f32 %v117, %v1805
  %1807 = vmatpush.msra.mxu0 %v1806
  %v1808 = vand.u32 %v116, 4294901760
  %v1809 = vsub.f32 %v116, %v1808
  %1810 = vmatpush.msra.mxu0 %v1809
  %v1811 = vand.u32 %v115, 4294901760
  %v1812 = vsub.f32 %v115, %v1811
  %1813 = vmatpush.msra.mxu0 %v1812
  %v1814 = vand.u32 %v114, 4294901760
  %v1815 = vsub.f32 %v114, %v1814
  %1816 = vmatpush.msra.mxu0 %v1815
  %v1817 = vand.u32 %v113, 4294901760
  %v1818 = vsub.f32 %v113, %v1817
  %1819 = vmatpush.msra.mxu0 %v1818
  %v1820 = vand.u32 %v264, 4294901760
  %v1821 = vsub.f32 %v264, %v1820
  %1822 = vmatmul.f32.gmra.mxu0 %v1821
  %v1823 = vpop.f32.mrf.mxu0
  %v1824 = vadd.f32 %v1770, %v1823
  %1825 = vdwg.mxu0
  %v1826 = vand.u32 %v128, 4294901760
  %1827 = vmatpush.msra.mxu0 %v1826
  %v1828 = vand.u32 %v127, 4294901760
  %1829 = vmatpush.msra.mxu0 %v1828
  %v1830 = vand.u32 %v126, 4294901760
  %1831 = vmatpush.msra.mxu0 %v1830
  %v1832 = vand.u32 %v125, 4294901760
  %1833 = vmatpush.msra.mxu0 %v1832
  %v1834 = vand.u32 %v124, 4294901760
  %1835 = vmatpush.msra.mxu0 %v1834
  %v1836 = vand.u32 %v123, 4294901760
  %1837 = vmatpush.msra.mxu0 %v1836
  %v1838 = vand.u32 %v122, 4294901760
  %1839 = vmatpush.msra.mxu0 %v1838
  %v1840 = vand.u32 %v121, 4294901760
  %1841 = vmatpush.msra.mxu0 %v1840
  %v1842 = vand.u32 %v120, 4294901760
  %1843 = vmatpush.msra.mxu0 %v1842
  %v1844 = vand.u32 %v119, 4294901760
  %1845 = vmatpush.msra.mxu0 %v1844
  %v1846 = vand.u32 %v118, 4294901760
  %1847 = vmatpush.msra.mxu0 %v1846
  %v1848 = vand.u32 %v117, 4294901760
  %1849 = vmatpush.msra.mxu0 %v1848
  %v1850 = vand.u32 %v116, 4294901760
  %1851 = vmatpush.msra.mxu0 %v1850
  %v1852 = vand.u32 %v115, 4294901760
  %1853 = vmatpush.msra.mxu0 %v1852
  %v1854 = vand.u32 %v114, 4294901760
  %1855 = vmatpush.msra.mxu0 %v1854
  %v1856 = vand.u32 %v113, 4294901760
  %1857 = vmatpush.msra.mxu0 %v1856
  %v1858 = vand.u32 %v264, 4294901760
  %v1859 = vsub.f32 %v264, %v1858
  %v1860 = vand.u32 %v1859, 4294901760
  %1861 = vmatmul.f32.gmra.mxu0 %v1860
  %v1862 = vpop.f32.mrf.mxu0
  %v1863 = vadd.f32 %v1824, %v1862
  %1864 = vdwg.mxu0
  %v1865 = vand.u32 %v128, 4294901760
  %v1866 = vsub.f32 %v128, %v1865
  %v1867 = vand.u32 %v1866, 4294901760
  %1868 = vmatpush.msra.mxu0 %v1867
  %v1869 = vand.u32 %v127, 4294901760
  %v1870 = vsub.f32 %v127, %v1869
  %v1871 = vand.u32 %v1870, 4294901760
  %1872 = vmatpush.msra.mxu0 %v1871
  %v1873 = vand.u32 %v126, 4294901760
  %v1874 = vsub.f32 %v126, %v1873
  %v1875 = vand.u32 %v1874, 4294901760
  %1876 = vmatpush.msra.mxu0 %v1875
  %v1877 = vand.u32 %v125, 4294901760
  %v1878 = vsub.f32 %v125, %v1877
  %v1879 = vand.u32 %v1878, 4294901760
  %1880 = vmatpush.msra.mxu0 %v1879
  %v1881 = vand.u32 %v124, 4294901760
  %v1882 = vsub.f32 %v124, %v1881
  %v1883 = vand.u32 %v1882, 4294901760
  %1884 = vmatpush.msra.mxu0 %v1883
  %v1885 = vand.u32 %v123, 4294901760
  %v1886 = vsub.f32 %v123, %v1885
  %v1887 = vand.u32 %v1886, 4294901760
  %1888 = vmatpush.msra.mxu0 %v1887
  %v1889 = vand.u32 %v122, 4294901760
  %v1890 = vsub.f32 %v122, %v1889
  %v1891 = vand.u32 %v1890, 4294901760
  %1892 = vmatpush.msra.mxu0 %v1891
  %v1893 = vand.u32 %v121, 4294901760
  %v1894 = vsub.f32 %v121, %v1893
  %v1895 = vand.u32 %v1894, 4294901760
  %1896 = vmatpush.msra.mxu0 %v1895
  %v1897 = vand.u32 %v120, 4294901760
  %v1898 = vsub.f32 %v120, %v1897
  %v1899 = vand.u32 %v1898, 4294901760
  %1900 = vmatpush.msra.mxu0 %v1899
  %v1901 = vand.u32 %v119, 4294901760
  %v1902 = vsub.f32 %v119, %v1901
  %v1903 = vand.u32 %v1902, 4294901760
  %1904 = vmatpush.msra.mxu0 %v1903
  %v1905 = vand.u32 %v118, 4294901760
  %v1906 = vsub.f32 %v118, %v1905
  %v1907 = vand.u32 %v1906, 4294901760
  %1908 = vmatpush.msra.mxu0 %v1907
  %v1909 = vand.u32 %v117, 4294901760
  %v1910 = vsub.f32 %v117, %v1909
  %v1911 = vand.u32 %v1910, 4294901760
  %1912 = vmatpush.msra.mxu0 %v1911
  %v1913 = vand.u32 %v116, 4294901760
  %v1914 = vsub.f32 %v116, %v1913
  %v1915 = vand.u32 %v1914, 4294901760
  %1916 = vmatpush.msra.mxu0 %v1915
  %v1917 = vand.u32 %v115, 4294901760
  %v1918 = vsub.f32 %v115, %v1917
  %v1919 = vand.u32 %v1918, 4294901760
  %1920 = vmatpush.msra.mxu0 %v1919
  %v1921 = vand.u32 %v114, 4294901760
  %v1922 = vsub.f32 %v114, %v1921
  %v1923 = vand.u32 %v1922, 4294901760
  %1924 = vmatpush.msra.mxu0 %v1923
  %v1925 = vand.u32 %v113, 4294901760
  %v1926 = vsub.f32 %v113, %v1925
  %v1927 = vand.u32 %v1926, 4294901760
  %1928 = vmatpush.msra.mxu0 %v1927
  %v1929 = vand.u32 %v264, 4294901760
  %1930 = vmatmul.f32.gmra.mxu0 %v1929
  %v1931 = vpop.f32.mrf.mxu0
  %v1932 = vadd.f32 %v1863, %v1931
  %1933 = vdwg.mxu0
  %v1934 = vand.u32 %v128, 4294901760
  %1935 = vmatpush.msra.mxu0 %v1934
  %v1936 = vand.u32 %v127, 4294901760
  %1937 = vmatpush.msra.mxu0 %v1936
  %v1938 = vand.u32 %v126, 4294901760
  %1939 = vmatpush.msra.mxu0 %v1938
  %v1940 = vand.u32 %v125, 4294901760
  %1941 = vmatpush.msra.mxu0 %v1940
  %v1942 = vand.u32 %v124, 4294901760
  %1943 = vmatpush.msra.mxu0 %v1942
  %v1944 = vand.u32 %v123, 4294901760
  %1945 = vmatpush.msra.mxu0 %v1944
  %v1946 = vand.u32 %v122, 4294901760
  %1947 = vmatpush.msra.mxu0 %v1946
  %v1948 = vand.u32 %v121, 4294901760
  %1949 = vmatpush.msra.mxu0 %v1948
  %v1950 = vand.u32 %v120, 4294901760
  %1951 = vmatpush.msra.mxu0 %v1950
  %v1952 = vand.u32 %v119, 4294901760
  %1953 = vmatpush.msra.mxu0 %v1952
  %v1954 = vand.u32 %v118, 4294901760
  %1955 = vmatpush.msra.mxu0 %v1954
  %v1956 = vand.u32 %v117, 4294901760
  %1957 = vmatpush.msra.mxu0 %v1956
  %v1958 = vand.u32 %v116, 4294901760
  %1959 = vmatpush.msra.mxu0 %v1958
  %v1960 = vand.u32 %v115, 4294901760
  %1961 = vmatpush.msra.mxu0 %v1960
  %v1962 = vand.u32 %v114, 4294901760
  %1963 = vmatpush.msra.mxu0 %v1962
  %v1964 = vand.u32 %v113, 4294901760
  %1965 = vmatpush.msra.mxu0 %v1964
  %v1966 = vand.u32 %v264, 4294901760
  %1967 = vmatmul.f32.gmra.mxu0 %v1966
  %v1968 = vpop.f32.mrf.mxu0
  %v1969 = vadd.f32 %v1932, %v1968
  %1970 = vdwg.mxu0
  %v1971 = vand.u32 %v144, 4294901760
  %1972 = vmatpush.msra.mxu0 %v1971
  %v1973 = vand.u32 %v143, 4294901760
  %1974 = vmatpush.msra.mxu0 %v1973
  %v1975 = vand.u32 %v142, 4294901760
  %1976 = vmatpush.msra.mxu0 %v1975
  %v1977 = vand.u32 %v141, 4294901760
  %1978 = vmatpush.msra.mxu0 %v1977
  %v1979 = vand.u32 %v140, 4294901760
  %1980 = vmatpush.msra.mxu0 %v1979
  %v1981 = vand.u32 %v139, 4294901760
  %1982 = vmatpush.msra.mxu0 %v1981
  %v1983 = vand.u32 %v138, 4294901760
  %1984 = vmatpush.msra.mxu0 %v1983
  %v1985 = vand.u32 %v137, 4294901760
  %1986 = vmatpush.msra.mxu0 %v1985
  %v1987 = vand.u32 %v136, 4294901760
  %1988 = vmatpush.msra.mxu0 %v1987
  %v1989 = vand.u32 %v135, 4294901760
  %1990 = vmatpush.msra.mxu0 %v1989
  %v1991 = vand.u32 %v134, 4294901760
  %1992 = vmatpush.msra.mxu0 %v1991
  %v1993 = vand.u32 %v133, 4294901760
  %1994 = vmatpush.msra.mxu0 %v1993
  %v1995 = vand.u32 %v132, 4294901760
  %1996 = vmatpush.msra.mxu0 %v1995
  %v1997 = vand.u32 %v131, 4294901760
  %1998 = vmatpush.msra.mxu0 %v1997
  %v1999 = vand.u32 %v130, 4294901760
  %2000 = vmatpush.msra.mxu0 %v1999
  %v2001 = vand.u32 %v129, 4294901760
  %2002 = vmatpush.msra.mxu0 %v2001
  %v2003 = vand.u32 %v265, 4294901760
  %v2004 = vsub.f32 %v265, %v2003
  %v2005 = vand.u32 %v2004, 4294901760
  %v2006 = vsub.f32 %v2004, %v2005
  %v2007 = vand.u32 %v2006, 4294901760
  %2008 = vmatmul.f32.gmra.mxu0 %v2007
  %v2009 = vpop.f32.mrf.mxu0
  %v2010 = vadd.f32 %v1969, %v2009
  %2011 = vdwg.mxu0
  %v2012 = vand.u32 %v144, 4294901760
  %v2013 = vsub.f32 %v144, %v2012
  %v2014 = vand.u32 %v2013, 4294901760
  %v2015 = vsub.f32 %v2013, %v2014
  %v2016 = vand.u32 %v2015, 4294901760
  %2017 = vmatpush.msra.mxu0 %v2016
  %v2018 = vand.u32 %v143, 4294901760
  %v2019 = vsub.f32 %v143, %v2018
  %v2020 = vand.u32 %v2019, 4294901760
  %v2021 = vsub.f32 %v2019, %v2020
  %v2022 = vand.u32 %v2021, 4294901760
  %2023 = vmatpush.msra.mxu0 %v2022
  %v2024 = vand.u32 %v142, 4294901760
  %v2025 = vsub.f32 %v142, %v2024
  %v2026 = vand.u32 %v2025, 4294901760
  %v2027 = vsub.f32 %v2025, %v2026
  %v2028 = vand.u32 %v2027, 4294901760
  %2029 = vmatpush.msra.mxu0 %v2028
  %v2030 = vand.u32 %v141, 4294901760
  %v2031 = vsub.f32 %v141, %v2030
  %v2032 = vand.u32 %v2031, 4294901760
  %v2033 = vsub.f32 %v2031, %v2032
  %v2034 = vand.u32 %v2033, 4294901760
  %2035 = vmatpush.msra.mxu0 %v2034
  %v2036 = vand.u32 %v140, 4294901760
  %v2037 = vsub.f32 %v140, %v2036
  %v2038 = vand.u32 %v2037, 4294901760
  %v2039 = vsub.f32 %v2037, %v2038
  %v2040 = vand.u32 %v2039, 4294901760
  %2041 = vmatpush.msra.mxu0 %v2040
  %v2042 = vand.u32 %v139, 4294901760
  %v2043 = vsub.f32 %v139, %v2042
  %v2044 = vand.u32 %v2043, 4294901760
  %v2045 = vsub.f32 %v2043, %v2044
  %v2046 = vand.u32 %v2045, 4294901760
  %2047 = vmatpush.msra.mxu0 %v2046
  %v2048 = vand.u32 %v138, 4294901760
  %v2049 = vsub.f32 %v138, %v2048
  %v2050 = vand.u32 %v2049, 4294901760
  %v2051 = vsub.f32 %v2049, %v2050
  %v2052 = vand.u32 %v2051, 4294901760
  %2053 = vmatpush.msra.mxu0 %v2052
  %v2054 = vand.u32 %v137, 4294901760
  %v2055 = vsub.f32 %v137, %v2054
  %v2056 = vand.u32 %v2055, 4294901760
  %v2057 = vsub.f32 %v2055, %v2056
  %v2058 = vand.u32 %v2057, 4294901760
  %2059 = vmatpush.msra.mxu0 %v2058
  %v2060 = vand.u32 %v136, 4294901760
  %v2061 = vsub.f32 %v136, %v2060
  %v2062 = vand.u32 %v2061, 4294901760
  %v2063 = vsub.f32 %v2061, %v2062
  %v2064 = vand.u32 %v2063, 4294901760
  %2065 = vmatpush.msra.mxu0 %v2064
  %v2066 = vand.u32 %v135, 4294901760
  %v2067 = vsub.f32 %v135, %v2066
  %v2068 = vand.u32 %v2067, 4294901760
  %v2069 = vsub.f32 %v2067, %v2068
  %v2070 = vand.u32 %v2069, 4294901760
  %2071 = vmatpush.msra.mxu0 %v2070
  %v2072 = vand.u32 %v134, 4294901760
  %v2073 = vsub.f32 %v134, %v2072
  %v2074 = vand.u32 %v2073, 4294901760
  %v2075 = vsub.f32 %v2073, %v2074
  %v2076 = vand.u32 %v2075, 4294901760
  %2077 = vmatpush.msra.mxu0 %v2076
  %v2078 = vand.u32 %v133, 4294901760
  %v2079 = vsub.f32 %v133, %v2078
  %v2080 = vand.u32 %v2079, 4294901760
  %v2081 = vsub.f32 %v2079, %v2080
  %v2082 = vand.u32 %v2081, 4294901760
  %2083 = vmatpush.msra.mxu0 %v2082
  %v2084 = vand.u32 %v132, 4294901760
  %v2085 = vsub.f32 %v132, %v2084
  %v2086 = vand.u32 %v2085, 4294901760
  %v2087 = vsub.f32 %v2085, %v2086
  %v2088 = vand.u32 %v2087, 4294901760
  %2089 = vmatpush.msra.mxu0 %v2088
  %v2090 = vand.u32 %v131, 4294901760
  %v2091 = vsub.f32 %v131, %v2090
  %v2092 = vand.u32 %v2091, 4294901760
  %v2093 = vsub.f32 %v2091, %v2092
  %v2094 = vand.u32 %v2093, 4294901760
  %2095 = vmatpush.msra.mxu0 %v2094
  %v2096 = vand.u32 %v130, 4294901760
  %v2097 = vsub.f32 %v130, %v2096
  %v2098 = vand.u32 %v2097, 4294901760
  %v2099 = vsub.f32 %v2097, %v2098
  %v2100 = vand.u32 %v2099, 4294901760
  %2101 = vmatpush.msra.mxu0 %v2100
  %v2102 = vand.u32 %v129, 4294901760
  %v2103 = vsub.f32 %v129, %v2102
  %v2104 = vand.u32 %v2103, 4294901760
  %v2105 = vsub.f32 %v2103, %v2104
  %v2106 = vand.u32 %v2105, 4294901760
  %2107 = vmatpush.msra.mxu0 %v2106
  %v2108 = vand.u32 %v265, 4294901760
  %2109 = vmatmul.f32.gmra.mxu0 %v2108
  %v2110 = vpop.f32.mrf.mxu0
  %v2111 = vadd.f32 %v2010, %v2110
  %2112 = vdwg.mxu0
  %v2113 = vand.u32 %v144, 4294901760
  %v2114 = vsub.f32 %v144, %v2113
  %2115 = vmatpush.msra.mxu0 %v2114
  %v2116 = vand.u32 %v143, 4294901760
  %v2117 = vsub.f32 %v143, %v2116
  %2118 = vmatpush.msra.mxu0 %v2117
  %v2119 = vand.u32 %v142, 4294901760
  %v2120 = vsub.f32 %v142, %v2119
  %2121 = vmatpush.msra.mxu0 %v2120
  %v2122 = vand.u32 %v141, 4294901760
  %v2123 = vsub.f32 %v141, %v2122
  %2124 = vmatpush.msra.mxu0 %v2123
  %v2125 = vand.u32 %v140, 4294901760
  %v2126 = vsub.f32 %v140, %v2125
  %2127 = vmatpush.msra.mxu0 %v2126
  %v2128 = vand.u32 %v139, 4294901760
  %v2129 = vsub.f32 %v139, %v2128
  %2130 = vmatpush.msra.mxu0 %v2129
  %v2131 = vand.u32 %v138, 4294901760
  %v2132 = vsub.f32 %v138, %v2131
  %2133 = vmatpush.msra.mxu0 %v2132
  %v2134 = vand.u32 %v137, 4294901760
  %v2135 = vsub.f32 %v137, %v2134
  %2136 = vmatpush.msra.mxu0 %v2135
  %v2137 = vand.u32 %v136, 4294901760
  %v2138 = vsub.f32 %v136, %v2137
  %2139 = vmatpush.msra.mxu0 %v2138
  %v2140 = vand.u32 %v135, 4294901760
  %v2141 = vsub.f32 %v135, %v2140
  %2142 = vmatpush.msra.mxu0 %v2141
  %v2143 = vand.u32 %v134, 4294901760
  %v2144 = vsub.f32 %v134, %v2143
  %2145 = vmatpush.msra.mxu0 %v2144
  %v2146 = vand.u32 %v133, 4294901760
  %v2147 = vsub.f32 %v133, %v2146
  %2148 = vmatpush.msra.mxu0 %v2147
  %v2149 = vand.u32 %v132, 4294901760
  %v2150 = vsub.f32 %v132, %v2149
  %2151 = vmatpush.msra.mxu0 %v2150
  %v2152 = vand.u32 %v131, 4294901760
  %v2153 = vsub.f32 %v131, %v2152
  %2154 = vmatpush.msra.mxu0 %v2153
  %v2155 = vand.u32 %v130, 4294901760
  %v2156 = vsub.f32 %v130, %v2155
  %2157 = vmatpush.msra.mxu0 %v2156
  %v2158 = vand.u32 %v129, 4294901760
  %v2159 = vsub.f32 %v129, %v2158
  %2160 = vmatpush.msra.mxu0 %v2159
  %v2161 = vand.u32 %v265, 4294901760
  %v2162 = vsub.f32 %v265, %v2161
  %2163 = vmatmul.f32.gmra.mxu0 %v2162
  %v2164 = vpop.f32.mrf.mxu0
  %v2165 = vadd.f32 %v2111, %v2164
  %2166 = vdwg.mxu0
  %v2167 = vand.u32 %v144, 4294901760
  %2168 = vmatpush.msra.mxu0 %v2167
  %v2169 = vand.u32 %v143, 4294901760
  %2170 = vmatpush.msra.mxu0 %v2169
  %v2171 = vand.u32 %v142, 4294901760
  %2172 = vmatpush.msra.mxu0 %v2171
  %v2173 = vand.u32 %v141, 4294901760
  %2174 = vmatpush.msra.mxu0 %v2173
  %v2175 = vand.u32 %v140, 4294901760
  %2176 = vmatpush.msra.mxu0 %v2175
  %v2177 = vand.u32 %v139, 4294901760
  %2178 = vmatpush.msra.mxu0 %v2177
  %v2179 = vand.u32 %v138, 4294901760
  %2180 = vmatpush.msra.mxu0 %v2179
  %v2181 = vand.u32 %v137, 4294901760
  %2182 = vmatpush.msra.mxu0 %v2181
  %v2183 = vand.u32 %v136, 4294901760
  %2184 = vmatpush.msra.mxu0 %v2183
  %v2185 = vand.u32 %v135, 4294901760
  %2186 = vmatpush.msra.mxu0 %v2185
  %v2187 = vand.u32 %v134, 4294901760
  %2188 = vmatpush.msra.mxu0 %v2187
  %v2189 = vand.u32 %v133, 4294901760
  %2190 = vmatpush.msra.mxu0 %v2189
  %v2191 = vand.u32 %v132, 4294901760
  %2192 = vmatpush.msra.mxu0 %v2191
  %v2193 = vand.u32 %v131, 4294901760
  %2194 = vmatpush.msra.mxu0 %v2193
  %v2195 = vand.u32 %v130, 4294901760
  %2196 = vmatpush.msra.mxu0 %v2195
  %v2197 = vand.u32 %v129, 4294901760
  %2198 = vmatpush.msra.mxu0 %v2197
  %v2199 = vand.u32 %v265, 4294901760
  %v2200 = vsub.f32 %v265, %v2199
  %v2201 = vand.u32 %v2200, 4294901760
  %2202 = vmatmul.f32.gmra.mxu0 %v2201
  %v2203 = vpop.f32.mrf.mxu0
  %v2204 = vadd.f32 %v2165, %v2203
  %2205 = vdwg.mxu0
  %v2206 = vand.u32 %v144, 4294901760
  %v2207 = vsub.f32 %v144, %v2206
  %v2208 = vand.u32 %v2207, 4294901760
  %2209 = vmatpush.msra.mxu0 %v2208
  %v2210 = vand.u32 %v143, 4294901760
  %v2211 = vsub.f32 %v143, %v2210
  %v2212 = vand.u32 %v2211, 4294901760
  %2213 = vmatpush.msra.mxu0 %v2212
  %v2214 = vand.u32 %v142, 4294901760
  %v2215 = vsub.f32 %v142, %v2214
  %v2216 = vand.u32 %v2215, 4294901760
  %2217 = vmatpush.msra.mxu0 %v2216
  %v2218 = vand.u32 %v141, 4294901760
  %v2219 = vsub.f32 %v141, %v2218
  %v2220 = vand.u32 %v2219, 4294901760
  %2221 = vmatpush.msra.mxu0 %v2220
  %v2222 = vand.u32 %v140, 4294901760
  %v2223 = vsub.f32 %v140, %v2222
  %v2224 = vand.u32 %v2223, 4294901760
  %2225 = vmatpush.msra.mxu0 %v2224
  %v2226 = vand.u32 %v139, 4294901760
  %v2227 = vsub.f32 %v139, %v2226
  %v2228 = vand.u32 %v2227, 4294901760
  %2229 = vmatpush.msra.mxu0 %v2228
  %v2230 = vand.u32 %v138, 4294901760
  %v2231 = vsub.f32 %v138, %v2230
  %v2232 = vand.u32 %v2231, 4294901760
  %2233 = vmatpush.msra.mxu0 %v2232
  %v2234 = vand.u32 %v137, 4294901760
  %v2235 = vsub.f32 %v137, %v2234
  %v2236 = vand.u32 %v2235, 4294901760
  %2237 = vmatpush.msra.mxu0 %v2236
  %v2238 = vand.u32 %v136, 4294901760
  %v2239 = vsub.f32 %v136, %v2238
  %v2240 = vand.u32 %v2239, 4294901760
  %2241 = vmatpush.msra.mxu0 %v2240
  %v2242 = vand.u32 %v135, 4294901760
  %v2243 = vsub.f32 %v135, %v2242
  %v2244 = vand.u32 %v2243, 4294901760
  %2245 = vmatpush.msra.mxu0 %v2244
  %v2246 = vand.u32 %v134, 4294901760
  %v2247 = vsub.f32 %v134, %v2246
  %v2248 = vand.u32 %v2247, 4294901760
  %2249 = vmatpush.msra.mxu0 %v2248
  %v2250 = vand.u32 %v133, 4294901760
  %v2251 = vsub.f32 %v133, %v2250
  %v2252 = vand.u32 %v2251, 4294901760
  %2253 = vmatpush.msra.mxu0 %v2252
  %v2254 = vand.u32 %v132, 4294901760
  %v2255 = vsub.f32 %v132, %v2254
  %v2256 = vand.u32 %v2255, 4294901760
  %2257 = vmatpush.msra.mxu0 %v2256
  %v2258 = vand.u32 %v131, 4294901760
  %v2259 = vsub.f32 %v131, %v2258
  %v2260 = vand.u32 %v2259, 4294901760
  %2261 = vmatpush.msra.mxu0 %v2260
  %v2262 = vand.u32 %v130, 4294901760
  %v2263 = vsub.f32 %v130, %v2262
  %v2264 = vand.u32 %v2263, 4294901760
  %2265 = vmatpush.msra.mxu0 %v2264
  %v2266 = vand.u32 %v129, 4294901760
  %v2267 = vsub.f32 %v129, %v2266
  %v2268 = vand.u32 %v2267, 4294901760
  %2269 = vmatpush.msra.mxu0 %v2268
  %v2270 = vand.u32 %v265, 4294901760
  %2271 = vmatmul.f32.gmra.mxu0 %v2270
  %v2272 = vpop.f32.mrf.mxu0
  %v2273 = vadd.f32 %v2204, %v2272
  %2274 = vdwg.mxu0
  %v2275 = vand.u32 %v144, 4294901760
  %2276 = vmatpush.msra.mxu0 %v2275
  %v2277 = vand.u32 %v143, 4294901760
  %2278 = vmatpush.msra.mxu0 %v2277
  %v2279 = vand.u32 %v142, 4294901760
  %2280 = vmatpush.msra.mxu0 %v2279
  %v2281 = vand.u32 %v141, 4294901760
  %2282 = vmatpush.msra.mxu0 %v2281
  %v2283 = vand.u32 %v140, 4294901760
  %2284 = vmatpush.msra.mxu0 %v2283
  %v2285 = vand.u32 %v139, 4294901760
  %2286 = vmatpush.msra.mxu0 %v2285
  %v2287 = vand.u32 %v138, 4294901760
  %2288 = vmatpush.msra.mxu0 %v2287
  %v2289 = vand.u32 %v137, 4294901760
  %2290 = vmatpush.msra.mxu0 %v2289
  %v2291 = vand.u32 %v136, 4294901760
  %2292 = vmatpush.msra.mxu0 %v2291
  %v2293 = vand.u32 %v135, 4294901760
  %2294 = vmatpush.msra.mxu0 %v2293
  %v2295 = vand.u32 %v134, 4294901760
  %2296 = vmatpush.msra.mxu0 %v2295
  %v2297 = vand.u32 %v133, 4294901760
  %2298 = vmatpush.msra.mxu0 %v2297
  %v2299 = vand.u32 %v132, 4294901760
  %2300 = vmatpush.msra.mxu0 %v2299
  %v2301 = vand.u32 %v131, 4294901760
  %2302 = vmatpush.msra.mxu0 %v2301
  %v2303 = vand.u32 %v130, 4294901760
  %2304 = vmatpush.msra.mxu0 %v2303
  %v2305 = vand.u32 %v129, 4294901760
  %2306 = vmatpush.msra.mxu0 %v2305
  %v2307 = vand.u32 %v265, 4294901760
  %2308 = vmatmul.f32.gmra.mxu0 %v2307
  %v2309 = vpop.f32.mrf.mxu0
  %v2310 = vadd.f32 %v2273, %v2309
  %2311 = vdwg.mxu0
  %v2312 = vand.u32 2147483647, %v946
  %vm2313 = vcmp.le.f32.partialorder %v2312, 0.7853982
  %vm2314 = vcmp.lt.s32.totalorder %v946, 0
  %v2315 = vand.u32 %v946, 2139095040
  %v2316 = vshrl.u32 %v2315, 23
  %v2317 = vsub.s32 %v2316, 127
  %v2318 = vand.u32 2147483647, %v946
  %v2319 = vand.u32 %v2318, 8388607
  %v2320 = vor.u32 %v2319, 8388608
  %v2321 = vsub.s32 0, %v2320
  %v2322 = vadd.s32 %v2317, 1
  %vm2323 = vcmp.gt.s32.totalorder %v2322, 0
  %v2324 = vsel %vm2323, %v2322, 0
  %v2325 = vshrl.u32 %v2324, 5
  %v2326 = vand.u32 %v2324, 31
  %v2327 = vsub.s32 32, %v2326
  %v2328 = vshrl.u32 683565275, %v2327
  %v2329 = vshll.u32 683565275, %v2326
  %v2330 = vshrl.u32 2475754826, %v2327
  %v2331 = vor.u32 %v2329, %v2330
  %v2332 = vshll.u32 2475754826, %v2326
  %v2333 = vshrl.u32 2131351028, %v2327
  %v2334 = vor.u32 %v2332, %v2333
  %v2335 = vshll.u32 2131351028, %v2326
  %v2336 = vshrl.u32 2102212464, %v2327
  %v2337 = vor.u32 %v2335, %v2336
  %v2338 = vshll.u32 2102212464, %v2326
  %v2339 = vshrl.u32 920167782, %v2327
  %v2340 = vor.u32 %v2338, %v2339
  %v2341 = vshll.u32 920167782, %v2326
  %v2342 = vshrl.u32 1326507024, %v2327
  %v2343 = vor.u32 %v2341, %v2342
  %vm2344 = vcmp.lt.s32.totalorder %v2325, 1
  %vm2345 = vcmp.lt.s32.totalorder %v2325, 2
  %vm2346 = vcmp.lt.s32.totalorder %v2325, 3
  %vm2347 = vcmp.lt.s32.totalorder %v2325, 4
  %v2348 = vsel %vm2344, %v2328, %v2331
  %v2349 = vsel %vm2347, %v2337, 2102212464
  %v2350 = vsel %vm2346, %v2334, %v2349
  %v2351 = vsel %vm2345, %v2348, %v2350
  %v2352 = vsel %vm2344, %v2331, %v2334
  %v2353 = vsel %vm2347, %v2340, 920167782
  %v2354 = vsel %vm2346, %v2337, %v2353
  %v2355 = vsel %vm2345, %v2352, %v2354
  %v2356 = vsel %vm2344, %v2334, %v2337
  %v2357 = vsel %vm2347, %v2343, 1326507024
  %v2358 = vsel %vm2346, %v2340, %v2357
  %v2359 = vsel %vm2345, %v2356, %v2358
  %v2360 = vshll.u32 %v2320, 8
  %v2361 = vand.u32 %v2360, 65535
  %v2362 = vshrl.u32 %v2360, 16
  %v2363 = vand.u32 %v2359, 65535
  %v2364 = vshrl.u32 %v2359, 16
  %v2365 = vmul.u32 %v2361, %v2363
  %v2366 = vmul.u32 %v2361, %v2364
  %v2367 = vmul.u32 %v2362, %v2363
  %v2368 = vmul.u32 %v2362, %v2364
  %v2369 = vshll.u32 %v2366, 16
  %v2370 = vshrl.u32 %v2366, 16
  %v2371 = vshll.u32 %v2367, 16
  %v2372 = vshrl.u32 %v2367, 16
  %vm2373 = vc.u32 %v2365, %v2369
  %v2374 = vsel %vm2373, 1, 0
  %v2375 = vadd.s32 %v2365, %v2369
  %v2376 = vadd.s32 %v2368, %v2374
  %vm2377 = vc.u32 %v2375, %v2371
  %v2378 = vsel %vm2377, 1, 0
  %v2379 = vadd.s32 %v2375, %v2371
  %v2380 = vadd.s32 %v2376, %v2378
  %v2381 = vadd.s32 %v2380, %v2370
  %v2382 = vadd.s32 %v2381, %v2372
  %v2383 = vand.u32 %v2360, 65535
  %v2384 = vshrl.u32 %v2360, 16
  %v2385 = vand.u32 %v2355, 65535
  %v2386 = vshrl.u32 %v2355, 16
  %v2387 = vmul.u32 %v2383, %v2385
  %v2388 = vmul.u32 %v2383, %v2386
  %v2389 = vmul.u32 %v2384, %v2385
  %v2390 = vmul.u32 %v2384, %v2386
  %v2391 = vshll.u32 %v2388, 16
  %v2392 = vshrl.u32 %v2388, 16
  %v2393 = vshll.u32 %v2389, 16
  %v2394 = vshrl.u32 %v2389, 16
  %vm2395 = vc.u32 %v2387, %v2391
  %v2396 = vsel %vm2395, 1, 0
  %v2397 = vadd.s32 %v2387, %v2391
  %v2398 = vadd.s32 %v2390, %v2396
  %vm2399 = vc.u32 %v2397, %v2393
  %v2400 = vsel %vm2399, 1, 0
  %v2401 = vadd.s32 %v2397, %v2393
  %v2402 = vadd.s32 %v2398, %v2400
  %v2403 = vadd.s32 %v2402, %v2392
  %v2404 = vadd.s32 %v2403, %v2394
  %v2405 = vmul.u32 %v2360, %v2351
  %v2406 = vadd.s32 %v2382, %v2401
  %vm2407 = vc.u32 %v2382, %v2401
  %v2408 = vadd.s32 %v2404, 1
  %v2409 = vsel %vm2407, %v2408, %v2404
  %v2410 = vadd.s32 %v2405, %v2409
  %v2411 = vadd.s32 %v2410, 536870912
  %v2412 = vshrl.u32 %v2411, 30
  %v2413 = vshll.u32 %v2412, 30
  %v2414 = vsub.s32 %v2410, %v2413
  %vm2415 = vcmp.lt.s32.totalorder %v2414, 0
  %v2416 = vsub.s32 0, %v2414
  %v2417 = vsel %vm2415, %v2416, %v2414
  %v2418 = vclz %v2417
  %v2419 = vsub.s32 %v2418, 2
  %vm2420 = vcmp.gt.s32.totalorder 0, %v2419
  %v2421 = vsel %vm2420, 0, %v2419
  %v2422 = vsub.s32 32, %v2421
  %v2423 = vshll.u32 %v2414, %v2421
  %v2424 = vshrl.u32 %v2406, %v2422
  %v2425 = vor.u32 %v2423, %v2424
  %v2426 = vsub.s32 4294967266, %v2421
  %v2427 = vadd.s32 %v2426, 127
  %v2428 = vshll.u32 %v2427, 23
  %v2429 = vor.u32 4788187, %v2428
  %v2430 = vand.u32 2147483647, %v2429
  %v2432 = vcvt.s32.f32 %v2425
  %v2433 = vmul.f32 %v2432, %v2430
  %v2434 = vxor.u32 %v2433, 2147483648
  %v2435 = vsel %vm2314, %v2434, %v2433
  %v2436 = vsub.s32 4, %v2412
  %v2437 = vsel %vm2314, %v2436, %v2412
  %v2438 = vsel %vm2313, %v946, %v2435
  %v2439 = vsel %vm2313, 0, %v2437
  %v2440 = vmul.f32 %v2438, %v2438
  %v2441 = vmul.f32 %v2440, -0.001358992
  %v2442 = vadd.f32 %v2441, 0.041655596
  %v2443 = vmul.f32 %v2440, %v2442
  %v2444 = vadd.f32 %v2443, -0.4999988
  %v2445 = vmul.f32 %v2440, %v2444
  %v2446 = vadd.f32 1.0, %v2445
  %v2447 = vmul.f32 %v2438, %v2438
  %v2448 = vmul.f32 %v2447, -0.00019511016
  %v2449 = vadd.f32 %v2448, 0.008332121
  %v2450 = vmul.f32 %v2447, %v2449
  %v2451 = vadd.f32 %v2450, -0.16666654
  %v2452 = vmul.f32 %v2447, %v2451
  %v2453 = vadd.f32 %v2452, 1.0
  %v2454 = vmul.f32 %v2453, %v2438
  %vm2455 = vweird.f32 %v946
  %v2456 = vadd.s32 %v2439, 3
  %v2457 = vand.u32 %v2456, 3
  %vm2458 = vcmp.lt.s32.totalorder %v2457, 2
  %vm2459 = vcmp.eq.s32.totalorder %v2457, 0
  %v2460 = vxor.u32 %v2454, 2147483648
  %v2461 = vsel %vm2459, %v2446, %v2460
  %vm2462 = vcmp.eq.s32.totalorder %v2457, 2
  %v2463 = vxor.u32 %v2446, 2147483648
  %v2464 = vsel %vm2462, %v2463, %v2454
  %v2465 = vsel %vm2458, %v2461, %v2464
  %v2466 = vsel %vm2455, nan, %v2465
  %v2467 = vand.u32 2147483647, %v1628
  %vm2468 = vcmp.le.f32.partialorder %v2467, 0.7853982
  %vm2469 = vcmp.lt.s32.totalorder %v1628, 0
  %v2470 = vand.u32 %v1628, 2139095040
  %v2471 = vshrl.u32 %v2470, 23
  %v2472 = vsub.s32 %v2471, 127
  %v2473 = vand.u32 2147483647, %v1628
  %v2474 = vand.u32 %v2473, 8388607
  %v2475 = vor.u32 %v2474, 8388608
  %v2476 = vsub.s32 0, %v2475
  %v2477 = vadd.s32 %v2472, 1
  %vm2478 = vcmp.gt.s32.totalorder %v2477, 0
  %v2479 = vsel %vm2478, %v2477, 0
  %v2480 = vshrl.u32 %v2479, 5
  %v2481 = vand.u32 %v2479, 31
  %v2482 = vsub.s32 32, %v2481
  %v2483 = vshrl.u32 683565275, %v2482
  %v2484 = vshll.u32 683565275, %v2481
  %v2485 = vshrl.u32 2475754826, %v2482
  %v2486 = vor.u32 %v2484, %v2485
  %v2487 = vshll.u32 2475754826, %v2481
  %v2488 = vshrl.u32 2131351028, %v2482
  %v2489 = vor.u32 %v2487, %v2488
  %v2490 = vshll.u32 2131351028, %v2481
  %v2491 = vshrl.u32 2102212464, %v2482
  %v2492 = vor.u32 %v2490, %v2491
  %v2493 = vshll.u32 2102212464, %v2481
  %v2494 = vshrl.u32 920167782, %v2482
  %v2495 = vor.u32 %v2493, %v2494
  %v2496 = vshll.u32 920167782, %v2481
  %v2497 = vshrl.u32 1326507024, %v2482
  %v2498 = vor.u32 %v2496, %v2497
  %vm2499 = vcmp.lt.s32.totalorder %v2480, 1
  %vm2500 = vcmp.lt.s32.totalorder %v2480, 2
  %vm2501 = vcmp.lt.s32.totalorder %v2480, 3
  %vm2502 = vcmp.lt.s32.totalorder %v2480, 4
  %v2503 = vsel %vm2499, %v2483, %v2486
  %v2504 = vsel %vm2502, %v2492, 2102212464
  %v2505 = vsel %vm2501, %v2489, %v2504
  %v2506 = vsel %vm2500, %v2503, %v2505
  %v2507 = vsel %vm2499, %v2486, %v2489
  %v2508 = vsel %vm2502, %v2495, 920167782
  %v2509 = vsel %vm2501, %v2492, %v2508
  %v2510 = vsel %vm2500, %v2507, %v2509
  %v2511 = vsel %vm2499, %v2489, %v2492
  %v2512 = vsel %vm2502, %v2498, 1326507024
  %v2513 = vsel %vm2501, %v2495, %v2512
  %v2514 = vsel %vm2500, %v2511, %v2513
  %v2515 = vshll.u32 %v2475, 8
  %v2516 = vand.u32 %v2515, 65535
  %v2517 = vshrl.u32 %v2515, 16
  %v2518 = vand.u32 %v2514, 65535
  %v2519 = vshrl.u32 %v2514, 16
  %v2520 = vmul.u32 %v2516, %v2518
  %v2521 = vmul.u32 %v2516, %v2519
  %v2522 = vmul.u32 %v2517, %v2518
  %v2523 = vmul.u32 %v2517, %v2519
  %v2524 = vshll.u32 %v2521, 16
  %v2525 = vshrl.u32 %v2521, 16
  %v2526 = vshll.u32 %v2522, 16
  %v2527 = vshrl.u32 %v2522, 16
  %vm2528 = vc.u32 %v2520, %v2524
  %v2529 = vsel %vm2528, 1, 0
  %v2530 = vadd.s32 %v2520, %v2524
  %v2531 = vadd.s32 %v2523, %v2529
  %vm2532 = vc.u32 %v2530, %v2526
  %v2533 = vsel %vm2532, 1, 0
  %v2534 = vadd.s32 %v2530, %v2526
  %v2535 = vadd.s32 %v2531, %v2533
  %v2536 = vadd.s32 %v2535, %v2525
  %v2537 = vadd.s32 %v2536, %v2527
  %v2538 = vand.u32 %v2515, 65535
  %v2539 = vshrl.u32 %v2515, 16
  %v2540 = vand.u32 %v2510, 65535
  %v2541 = vshrl.u32 %v2510, 16
  %v2542 = vmul.u32 %v2538, %v2540
  %v2543 = vmul.u32 %v2538, %v2541
  %v2544 = vmul.u32 %v2539, %v2540
  %v2545 = vmul.u32 %v2539, %v2541
  %v2546 = vshll.u32 %v2543, 16
  %v2547 = vshrl.u32 %v2543, 16
  %v2548 = vshll.u32 %v2544, 16
  %v2549 = vshrl.u32 %v2544, 16
  %vm2550 = vc.u32 %v2542, %v2546
  %v2551 = vsel %vm2550, 1, 0
  %v2552 = vadd.s32 %v2542, %v2546
  %v2553 = vadd.s32 %v2545, %v2551
  %vm2554 = vc.u32 %v2552, %v2548
  %v2555 = vsel %vm2554, 1, 0
  %v2556 = vadd.s32 %v2552, %v2548
  %v2557 = vadd.s32 %v2553, %v2555
  %v2558 = vadd.s32 %v2557, %v2547
  %v2559 = vadd.s32 %v2558, %v2549
  %v2560 = vmul.u32 %v2515, %v2506
  %v2561 = vadd.s32 %v2537, %v2556
  %vm2562 = vc.u32 %v2537, %v2556
  %v2563 = vadd.s32 %v2559, 1
  %v2564 = vsel %vm2562, %v2563, %v2559
  %v2565 = vadd.s32 %v2560, %v2564
  %v2566 = vadd.s32 %v2565, 536870912
  %v2567 = vshrl.u32 %v2566, 30
  %v2568 = vshll.u32 %v2567, 30
  %v2569 = vsub.s32 %v2565, %v2568
  %vm2570 = vcmp.lt.s32.totalorder %v2569, 0
  %v2571 = vsub.s32 0, %v2569
  %v2572 = vsel %vm2570, %v2571, %v2569
  %v2573 = vclz %v2572
  %v2574 = vsub.s32 %v2573, 2
  %vm2575 = vcmp.gt.s32.totalorder 0, %v2574
  %v2576 = vsel %vm2575, 0, %v2574
  %v2577 = vsub.s32 32, %v2576
  %v2578 = vshll.u32 %v2569, %v2576
  %v2579 = vshrl.u32 %v2561, %v2577
  %v2580 = vor.u32 %v2578, %v2579
  %v2581 = vsub.s32 4294967266, %v2576
  %v2582 = vadd.s32 %v2581, 127
  %v2583 = vshll.u32 %v2582, 23
  %v2584 = vor.u32 4788187, %v2583
  %v2585 = vand.u32 2147483647, %v2584
  %v2587 = vcvt.s32.f32 %v2580
  %v2588 = vmul.f32 %v2587, %v2585
  %v2589 = vxor.u32 %v2588, 2147483648
  %v2590 = vsel %vm2469, %v2589, %v2588
  %v2591 = vsub.s32 4, %v2567
  %v2592 = vsel %vm2469, %v2591, %v2567
  %v2593 = vsel %vm2468, %v1628, %v2590
  %v2594 = vsel %vm2468, 0, %v2592
  %v2595 = vmul.f32 %v2593, %v2593
  %v2596 = vmul.f32 %v2595, -0.001358992
  %v2597 = vadd.f32 %v2596, 0.041655596
  %v2598 = vmul.f32 %v2595, %v2597
  %v2599 = vadd.f32 %v2598, -0.4999988
  %v2600 = vmul.f32 %v2595, %v2599
  %v2601 = vadd.f32 1.0, %v2600
  %v2602 = vmul.f32 %v2593, %v2593
  %v2603 = vmul.f32 %v2602, -0.00019511016
  %v2604 = vadd.f32 %v2603, 0.008332121
  %v2605 = vmul.f32 %v2602, %v2604
  %v2606 = vadd.f32 %v2605, -0.16666654
  %v2607 = vmul.f32 %v2602, %v2606
  %v2608 = vadd.f32 %v2607, 1.0
  %v2609 = vmul.f32 %v2608, %v2593
  %vm2610 = vweird.f32 %v1628
  %v2611 = vadd.s32 %v2594, 3
  %v2612 = vand.u32 %v2611, 3
  %vm2613 = vcmp.lt.s32.totalorder %v2612, 2
  %vm2614 = vcmp.eq.s32.totalorder %v2612, 0
  %v2615 = vxor.u32 %v2609, 2147483648
  %v2616 = vsel %vm2614, %v2601, %v2615
  %vm2617 = vcmp.eq.s32.totalorder %v2612, 2
  %v2618 = vxor.u32 %v2601, 2147483648
  %v2619 = vsel %vm2617, %v2618, %v2609
  %v2620 = vsel %vm2613, %v2616, %v2619
  %v2621 = vsel %vm2610, nan, %v2620
  %v2622 = vmul.f32 %v2466, %v2466
  %v2623 = vmul.f32 %v2621, %v2621
  %v2624 = vmul.f32 %v2622, 2.0
  %v2625 = vsub.f32 1.0, %v2624
  %v2626 = vand.u32 2147483647, %v2310
  %vm2627 = vcmp.le.f32.partialorder %v2626, 0.7853982
  %vm2628 = vcmp.lt.s32.totalorder %v2310, 0
  %v2629 = vand.u32 %v2310, 2139095040
  %v2630 = vshrl.u32 %v2629, 23
  %v2631 = vsub.s32 %v2630, 127
  %v2632 = vand.u32 2147483647, %v2310
  %v2633 = vand.u32 %v2632, 8388607
  %v2634 = vor.u32 %v2633, 8388608
  %v2635 = vsub.s32 0, %v2634
  %v2636 = vadd.s32 %v2631, 1
  %vm2637 = vcmp.gt.s32.totalorder %v2636, 0
  %v2638 = vsel %vm2637, %v2636, 0
  %v2639 = vshrl.u32 %v2638, 5
  %v2640 = vand.u32 %v2638, 31
  %v2641 = vsub.s32 32, %v2640
  %v2642 = vshrl.u32 683565275, %v2641
  %v2643 = vshll.u32 683565275, %v2640
  %v2644 = vshrl.u32 2475754826, %v2641
  %v2645 = vor.u32 %v2643, %v2644
  %v2646 = vshll.u32 2475754826, %v2640
  %v2647 = vshrl.u32 2131351028, %v2641
  %v2648 = vor.u32 %v2646, %v2647
  %v2649 = vshll.u32 2131351028, %v2640
  %v2650 = vshrl.u32 2102212464, %v2641
  %v2651 = vor.u32 %v2649, %v2650
  %v2652 = vshll.u32 2102212464, %v2640
  %v2653 = vshrl.u32 920167782, %v2641
  %v2654 = vor.u32 %v2652, %v2653
  %v2655 = vshll.u32 920167782, %v2640
  %v2656 = vshrl.u32 1326507024, %v2641
  %v2657 = vor.u32 %v2655, %v2656
  %vm2658 = vcmp.lt.s32.totalorder %v2639, 1
  %vm2659 = vcmp.lt.s32.totalorder %v2639, 2
  %vm2660 = vcmp.lt.s32.totalorder %v2639, 3
  %vm2661 = vcmp.lt.s32.totalorder %v2639, 4
  %v2662 = vsel %vm2658, %v2642, %v2645
  %v2663 = vsel %vm2661, %v2651, 2102212464
  %v2664 = vsel %vm2660, %v2648, %v2663
  %v2665 = vsel %vm2659, %v2662, %v2664
  %v2666 = vsel %vm2658, %v2645, %v2648
  %v2667 = vsel %vm2661, %v2654, 920167782
  %v2668 = vsel %vm2660, %v2651, %v2667
  %v2669 = vsel %vm2659, %v2666, %v2668
  %v2670 = vsel %vm2658, %v2648, %v2651
  %v2671 = vsel %vm2661, %v2657, 1326507024
  %v2672 = vsel %vm2660, %v2654, %v2671
  %v2673 = vsel %vm2659, %v2670, %v2672
  %v2674 = vshll.u32 %v2634, 8
  %v2675 = vand.u32 %v2674, 65535
  %v2676 = vshrl.u32 %v2674, 16
  %v2677 = vand.u32 %v2673, 65535
  %v2678 = vshrl.u32 %v2673, 16
  %v2679 = vmul.u32 %v2675, %v2677
  %v2680 = vmul.u32 %v2675, %v2678
  %v2681 = vmul.u32 %v2676, %v2677
  %v2682 = vmul.u32 %v2676, %v2678
  %v2683 = vshll.u32 %v2680, 16
  %v2684 = vshrl.u32 %v2680, 16
  %v2685 = vshll.u32 %v2681, 16
  %v2686 = vshrl.u32 %v2681, 16
  %vm2687 = vc.u32 %v2679, %v2683
  %v2688 = vsel %vm2687, 1, 0
  %v2689 = vadd.s32 %v2679, %v2683
  %v2690 = vadd.s32 %v2682, %v2688
  %vm2691 = vc.u32 %v2689, %v2685
  %v2692 = vsel %vm2691, 1, 0
  %v2693 = vadd.s32 %v2689, %v2685
  %v2694 = vadd.s32 %v2690, %v2692
  %v2695 = vadd.s32 %v2694, %v2684
  %v2696 = vadd.s32 %v2695, %v2686
  %v2697 = vand.u32 %v2674, 65535
  %v2698 = vshrl.u32 %v2674, 16
  %v2699 = vand.u32 %v2669, 65535
  %v2700 = vshrl.u32 %v2669, 16
  %v2701 = vmul.u32 %v2697, %v2699
  %v2702 = vmul.u32 %v2697, %v2700
  %v2703 = vmul.u32 %v2698, %v2699
  %v2704 = vmul.u32 %v2698, %v2700
  %v2705 = vshll.u32 %v2702, 16
  %v2706 = vshrl.u32 %v2702, 16
  %v2707 = vshll.u32 %v2703, 16
  %v2708 = vshrl.u32 %v2703, 16
  %vm2709 = vc.u32 %v2701, %v2705
  %v2710 = vsel %vm2709, 1, 0
  %v2711 = vadd.s32 %v2701, %v2705
  %v2712 = vadd.s32 %v2704, %v2710
  %vm2713 = vc.u32 %v2711, %v2707
  %v2714 = vsel %vm2713, 1, 0
  %v2715 = vadd.s32 %v2711, %v2707
  %v2716 = vadd.s32 %v2712, %v2714
  %v2717 = vadd.s32 %v2716, %v2706
  %v2718 = vadd.s32 %v2717, %v2708
  %v2719 = vmul.u32 %v2674, %v2665
  %v2720 = vadd.s32 %v2696, %v2715
  %vm2721 = vc.u32 %v2696, %v2715
  %v2722 = vadd.s32 %v2718, 1
  %v2723 = vsel %vm2721, %v2722, %v2718
  %v2724 = vadd.s32 %v2719, %v2723
  %v2725 = vadd.s32 %v2724, 536870912
  %v2726 = vshrl.u32 %v2725, 30
  %v2727 = vshll.u32 %v2726, 30
  %v2728 = vsub.s32 %v2724, %v2727
  %vm2729 = vcmp.lt.s32.totalorder %v2728, 0
  %v2730 = vsub.s32 0, %v2728
  %v2731 = vsel %vm2729, %v2730, %v2728
  %v2732 = vclz %v2731
  %v2733 = vsub.s32 %v2732, 2
  %vm2734 = vcmp.gt.s32.totalorder 0, %v2733
  %v2735 = vsel %vm2734, 0, %v2733
  %v2736 = vsub.s32 32, %v2735
  %v2737 = vshll.u32 %v2728, %v2735
  %v2738 = vshrl.u32 %v2720, %v2736
  %v2739 = vor.u32 %v2737, %v2738
  %v2740 = vsub.s32 4294967266, %v2735
  %v2741 = vadd.s32 %v2740, 127
  %v2742 = vshll.u32 %v2741, 23
  %v2743 = vor.u32 4788187, %v2742
  %v2744 = vand.u32 2147483647, %v2743
  %v2746 = vcvt.s32.f32 %v2739
  %v2747 = vmul.f32 %v2746, %v2744
  %v2748 = vxor.u32 %v2747, 2147483648
  %v2749 = vsel %vm2628, %v2748, %v2747
  %v2750 = vsub.s32 4, %v2726
  %v2751 = vsel %vm2628, %v2750, %v2726
  %v2752 = vsel %vm2627, %v2310, %v2749
  %v2753 = vsel %vm2627, 0, %v2751
  %v2754 = vmul.f32 %v2752, %v2752
  %v2755 = vmul.f32 %v2754, -0.001358992
  %v2756 = vadd.f32 %v2755, 0.041655596
  %v2757 = vmul.f32 %v2754, %v2756
  %v2758 = vadd.f32 %v2757, -0.4999988
  %v2759 = vmul.f32 %v2754, %v2758
  %v2760 = vadd.f32 1.0, %v2759
  %v2761 = vmul.f32 %v2752, %v2752
  %v2762 = vmul.f32 %v2761, -0.00019511016
  %v2763 = vadd.f32 %v2762, 0.008332121
  %v2764 = vmul.f32 %v2761, %v2763
  %v2765 = vadd.f32 %v2764, -0.16666654
  %v2766 = vmul.f32 %v2761, %v2765
  %v2767 = vadd.f32 %v2766, 1.0
  %v2768 = vmul.f32 %v2767, %v2752
  %vm2769 = vweird.f32 %v2310
  %v2770 = vand.u32 %v2753, 3
  %vm2771 = vcmp.lt.s32.totalorder %v2770, 2
  %vm2772 = vcmp.eq.s32.totalorder %v2770, 0
  %v2773 = vxor.u32 %v2768, 2147483648
  %v2774 = vsel %vm2772, %v2760, %v2773
  %vm2775 = vcmp.eq.s32.totalorder %v2770, 2
  %v2776 = vxor.u32 %v2760, 2147483648
  %v2777 = vsel %vm2775, %v2776, %v2768
  %v2778 = vsel %vm2771, %v2774, %v2777
  %v2779 = vsel %vm2769, nan, %v2778
  %v2780 = vadd.f32 %v2625, %v2779
  %v2781 = vmul.f32 %v2780, 0.5
  %v2782 = vmul.f32 %v2781, %v2623
  %v2783 = vadd.f32 %v2622, %v2782
  %v2784 = vmax.f32 %v2783, 0.0
  %v2785 = vmin.f32 %v2784, 1.0
  %v2786 = vrsqrt.pop %v2785
  %v2787 = vmul.f32 %v2786, %v2785
  %v2788 = vmul.f32 %v2787, %v2786
  %v2789 = vmul.f32 0.5, %v2788
  %v2790 = vsub.f32 1.5, %v2789
  %v2791 = vmul.f32 %v2786, %v2790
  %v2792 = vmul.f32 %v2785, %v2791
  %vm2793 = vcmp.eq.f32.partialorder %v2785, inf
  %v2794 = vsel %vm2793, %v2785, %v2792
  %vm2795 = vcmp.eq.f32.partialorder %v2785, 0.0
  %v2796 = vand.u32 %v2785, 2147483648
  %v2797 = vsel %vm2795, %v2796, %v2794
  %v2798 = vmul.f32 %v2797, %v2785
  %v2799 = vmul.f32 %v2785, 0.0421632
  %v2800 = vadd.f32 %v2799, 0.024181312
  %v2801 = vmul.f32 %v2800, %v2785
  %v2802 = vadd.f32 %v2801, 0.045470025
  %v2803 = vmul.f32 %v2802, %v2785
  %v2804 = vadd.f32 %v2803, 0.074953005
  %v2805 = vmul.f32 %v2804, %v2785
  %v2806 = vadd.f32 %v2805, 0.16666752
  %v2807 = vmul.f32 %v2798, %v2806
  %v2808 = vadd.f32 %v2797, %v2807
  %v2809 = vsub.f32 1.0, %v2797
  %v2810 = vmul.f32 %v2809, 0.5
  %v2811 = vrsqrt.pop %v2810
  %v2812 = vmul.f32 %v2811, %v2810
  %v2813 = vmul.f32 %v2812, %v2811
  %v2814 = vmul.f32 0.5, %v2813
  %v2815 = vsub.f32 1.5, %v2814
  %v2816 = vmul.f32 %v2811, %v2815
  %v2817 = vmul.f32 %v2810, %v2816
  %vm2818 = vcmp.eq.f32.partialorder %v2810, inf
  %v2819 = vsel %vm2818, %v2810, %v2817
  %vm2820 = vcmp.eq.f32.partialorder %v2810, 0.0
  %v2821 = vand.u32 %v2810, 2147483648
  %v2822 = vsel %vm2820, %v2821, %v2819
  %v2823 = vmul.f32 %v2822, %v2810
  %v2824 = vmul.f32 %v2810, 0.0421632
  %v2825 = vadd.f32 %v2824, 0.024181312
  %v2826 = vmul.f32 %v2825, %v2810
  %v2827 = vadd.f32 %v2826, 0.045470025
  %v2828 = vmul.f32 %v2827, %v2810
  %v2829 = vadd.f32 %v2828, 0.074953005
  %v2830 = vmul.f32 %v2829, %v2810
  %v2831 = vadd.f32 %v2830, 0.16666752
  %v2832 = vmul.f32 %v2823, %v2831
  %v2833 = vadd.f32 %v2822, %v2832
  %v2834 = vmul.f32 %v2833, 2.0
  %v2835 = vsub.f32 1.5707964, %v2834
  %vm2836 = vcmp.gt.f32.partialorder %v2797, 0.5
  %v2837 = vsel %vm2836, %v2835, %v2808
  %v2838 = vmul.f32 %v2837, 2.0
  %v2839 = vadd.f32 %v2838, 0.0
  %v2840 = vadd.f32 %v2839, 0.0
  %2841 = vst [vmem:[%s2] sm:$0xff] %v257
  %2842 = vst [vmem:[%s3] sm:$0xff] %v2840
  // Predicated region
  $region10: #{combined_distance_loss.1} parent=0 // pred_check
    _
  $region11: #{combined_distance_loss.1} parent=0 // pred_check_branch
    %2844 = sbr.rel (0) target = $region13
  $region12: #{combined_distance_loss.1} parent=0 // pred_region
    _
  $region13: #{combined_distance_loss.1} parent=0 // pred_fallthru
    _
  // Predicated region
  $region14: #{combined_distance_loss.1} parent=0 // pred_check
    _
  $region15: #{combined_distance_loss.1} parent=0 // pred_check_branch
    %2846 = sbr.rel (0) target = $region17
  $region16: #{combined_distance_loss.1} parent=0 // pred_region
    _
  $region17: #{combined_distance_loss.1} parent=0 // pred_fallthru
    _
  // Predicated region
  $region18: #{combined_distance_loss.1} parent=0 // pred_check
    _
  $region19: #{combined_distance_loss.1} parent=0 // pred_check_branch
    %2848 = sbr.rel (0) target = $region21
  $region20: #{combined_distance_loss.1} parent=0 // pred_region
    _
  $region21: #{combined_distance_loss.1} parent=0 // pred_fallthru
    _
  // Predicated region
  $region22: #{combined_distance_loss.1} parent=0 // pred_check
    _
  $region23: #{combined_distance_loss.1} parent=0 // pred_check_branch
    %2850 = sbr.rel (0) target = $region25
  $region24: #{combined_distance_loss.1} parent=0 // pred_region
    _
  $region25: #{combined_distance_loss.1} parent=0 // pred_fallthru
    _

</llo_original>
